<compile_context>
chip_gen: v6e
topology: v6e:2x2x1
jax: 0.10.0
libtpu: 0.0.40
codegen_flags: <defaults>
</compile_context>

<pallas_src>
import numpy as np
import jax
import jax.numpy as jnp
from jax.experimental import pallas as pl
from jax.experimental.pallas import tpu as pltpu


def _default_mxu_bf16():
    """bf16 MXU operands on v6e / v7x; f32 elsewhere (v5e has no bf16 VPU/EUP)."""
    try:
        kind = jax.devices()[0].device_kind.lower()
    except Exception:
        return False
    return any(tag in kind for tag in ("v6", "v7", "trillium"))


# ----------------------------------------------------------------------------
# Pallas kernel: grid = (batch,); the whole denoising loop runs in-kernel.
# ----------------------------------------------------------------------------
def make_denoise_kernel(H, W, hidden, cp, nsteps):
    hw = H * W
    # flattened-index offset of 3x3 neighbour (dy-1, dx-1), tap k = dy*3 + dx
    offs = [(dy - 1) * W + (dx - 1) for dy in range(3) for dx in range(3)]

    def kernel(scal_ref, x0_ref, cond_ref, mask_ref, w1_ref, w2_ref, b2_ref,
               out_ref):
        # Loop-invariant operands, loaded once (masks serve both convs).
        m9 = mask_ref[...]                       # (9*cp, hw) SAME-padding masks
        w1 = w1_ref[...]                         # (hidden, 9*cp) im2col conv1
        w2 = w2_ref[...]                         # (9*cp, hidden) tap-stacked conv2
        b2 = b2_ref[...]                         # (cp, hw)       lane-dense bias
        mxd = w1.dtype                           # MXU operand dtype (f32 / bf16)

        lat0 = x0_ref[0]                         # (cp, hw) latents, pre-scaled by
                                                 # init_noise_sigma in the wrapper

        def step(i, lat):
            inv_scale = scal_ref[i, 0]           # 1 / sqrt(sigma_i^2 + 1)
            dt = scal_ref[i, 1]                  # sigma_{i+1} - sigma_i

            x = lat * inv_scale                  # scheduler.scale_model_input

            # conv1 (3x3, C->hidden), activation-side im2col: stack the nine
            # rolled + masked copies of x along the contraction dimension.
            taps = []
            for k in range(9):
                if k == 4:
                    taps.append(x)               # centre tap: no shift
                else:
                    taps.append(pltpu.roll(x, shift=(-offs[k]) % hw, axis=1))
            x9 = jnp.concatenate(taps, axis=0) * m9              # (9*cp, hw)

            z1 = jnp.dot(w1, x9.astype(mxd),
                         preferred_element_type=jnp.float32)     # (hidden, hw)

            # + per-step added-cond embedding + text ctx + conv1 bias (hoisted,
            # lane-dense, indexed by step on an untiled leading dim)
            h = z1 + cond_ref[0, i]
            h = h * jax.nn.sigmoid(h)                            # SiLU (f32)

            # conv2 (3x3, hidden->C), weight-side tap stacking (small Cout).
            z2 = jnp.dot(w2, h.astype(mxd),
                         preferred_element_type=jnp.float32)     # (9*cp, hw)
            eps = z2[4 * cp:5 * cp, :]                           # centre tap
            for k in range(9):
                if k == 4:
                    continue
                zk = pltpu.roll(z2[k * cp:(k + 1) * cp, :],
                                shift=(-offs[k]) % hw, axis=1)
                eps = eps + zk * m9[k * cp:(k + 1) * cp, :]
            eps = eps + b2                                       # noise prediction

            # Euler step (gamma=0, epsilon prediction)
            return lat + eps * dt

        out_ref[0] = jax.lax.fori_loop(0, nsteps, step, lat0, unroll=True)

    return kernel


# ----------------------------------------------------------------------------
# Glue (plain JAX / numpy): masks, conditioning MLP, parameter init, wrapper.
# ----------------------------------------------------------------------------
def make_boundary_masks(H, W):
    """mask[k, p] = 1 iff the 3x3 tap k of output pixel p lies inside the image."""
    m = np.zeros((9, H, W), np.float32)
    for dy in range(3):
        for dx in range(3):
            k = dy * 3 + dx
            ys = slice(max(0, 1 - dy), H - max(0, dy - 1))
            xs = slice(max(0, 1 - dx), W - max(0, dx - 1))
            m[k, ys, xs] = 1.0
    return jnp.asarray(m.reshape(9, H * W))


def timestep_embedding(t, dim):
    half = dim // 2
    freqs = jnp.exp(-jnp.log(10000.0) * jnp.arange(half, dtype=jnp.float32) / half)
    args = t.astype(jnp.float32)[:, None] * freqs[None, :]
    return jnp.concatenate([jnp.cos(args), jnp.sin(args)], axis=-1)


def compute_step_conditioning(timesteps, pooled, time_ids, params):
    # Per-step "added cond" embedding (glue; tiny MLP, constant per step).
    temb = timestep_embedding(timesteps, params["wt"].shape[0])      # (NSTEPS, TEMB)
    t_part = temb @ params["wt"]                                     # (NSTEPS, HIDDEN)
    p_part = pooled.astype(jnp.float32) @ params["wp"]               # (B, HIDDEN)
    i_part = time_ids.astype(jnp.float32) @ params["wid"]            # (B, HIDDEN)
    cond = t_part[:, None, :] + (p_part + i_part)[None, :, :] + params["bc"][None, None, :]
    return jax.nn.silu(cond)                                         # (NSTEPS, B, HIDDEN)


def init_params(key, c, hidden, dtext, dpool, tid, temb_dim):
    ks = jax.random.split(key, 6)

    def nrm(k, shape, fan_in):
        return jax.random.normal(k, shape, jnp.float32) / np.sqrt(fan_in)

    return {
        "w1": nrm(ks[0], (9, c, hidden), 9 * c),        # conv1 3x3 weights
        "b1": jnp.zeros((1, hidden), jnp.float32),
        "wc": nrm(ks[1], (dtext, hidden), dtext),        # text-context proj
        "w2": nrm(ks[2], (9, hidden, c), 9 * hidden),    # conv2 3x3 weights
        "b2": jnp.zeros((1, c), jnp.float32),
        "wt": nrm(ks[3], (temb_dim, hidden), temb_dim),  # timestep emb proj
        "wp": nrm(ks[4], (dpool, hidden), dpool),        # pooled prompt proj
        "wid": nrm(ks[5], (tid, hidden), tid),           # add_time_ids proj
        "bc": jnp.zeros((hidden,), jnp.float32),
    }


def denoising_loop_pallas(initial_latents_nchw, text_embeddings,
                          pooled_prompt_embeds, add_time_ids,
                          params, sigmas, timesteps, *, mxu_bf16=None):
    B, C, H, W = initial_latents_nchw.shape
    HW = H * W
    nsteps = timesteps.shape[0]
    hidden = params["w1"].shape[-1]
    assert hidden % 8 == 0 and HW % 128 == 0
    CP = -(-C // 8) * 8                              # pad channels to a sublane tile
    if mxu_bf16 is None:
        mxu_bf16 = _default_mxu_bf16()
    mx_dtype = jnp.bfloat16 if mxu_bf16 else jnp.float32

    sig = sigmas.astype(jnp.float32)

    # latents: NCHW -> (B, CP, HW), channels on sublanes, lane-dense HW,
    # pre-scaled by init_noise_sigma = sqrt(sigma_max^2 + 1)
    x0 = initial_latents_nchw.astype(jnp.float32).reshape(B, C, HW)
    x0 = jnp.pad(x0, ((0, 0), (0, CP - C), (0, 0))) * jnp.sqrt(sig[0] ** 2 + 1.0)

    # hoisted per-step additive term (added-cond MLP + text ctx + conv1 bias),
    # pre-broadcast lane-dense to (B, NSTEPS, hidden, HW): one DMA per image.
    cond = compute_step_conditioning(timesteps, pooled_prompt_embeds,
                                     add_time_ids, params)               # (NSTEPS,B,hidden)
    ctx = jnp.mean(text_embeddings.astype(jnp.float32), axis=1) @ params["wc"]
    add = cond + ctx[None] + params["b1"].reshape(1, 1, hidden)          # (NSTEPS,B,hidden)
    addslab = jnp.broadcast_to(
        jnp.transpose(add, (1, 0, 2))[:, :, :, None], (B, nsteps, hidden, HW))

    # conv1 as im2col weights (hidden, 9*CP); conv2 as tap-stacked (9*CP, hidden)
    w1p = jnp.pad(params["w1"], ((0, 0), (0, CP - C), (0, 0)))           # (9, CP, hidden)
    w1_i2c = jnp.transpose(w1p, (2, 0, 1)).reshape(hidden, 9 * CP).astype(mx_dtype)
    w2p = jnp.pad(params["w2"], ((0, 0), (0, 0), (0, CP - C)))           # (9, hidden, CP)
    w2cat = jnp.transpose(w2p, (0, 2, 1)).reshape(9 * CP, hidden).astype(mx_dtype)
    b2bc = jnp.broadcast_to(
        jnp.pad(params["b2"].reshape(-1), (0, CP - C)).reshape(CP, 1), (CP, HW))

    # SAME-padding boundary masks, broadcast over the CP sublane block so one
    # (9*CP, HW) value serves conv1's im2col stack and conv2's tap combine.
    m = make_boundary_masks(H, W)                                        # (9, HW)
    mask9 = jnp.broadcast_to(m[:, None, :], (9, CP, HW)).reshape(9 * CP, HW)

    # per-step scheduler scalars (SMEM): [1/sqrt(sigma_i^2+1), sigma_{i+1}-sigma_i]
    scal = jnp.stack([1.0 / jnp.sqrt(sig[:-1] ** 2 + 1.0),
                      sig[1:] - sig[:-1]], axis=1)                       # (NSTEPS, 2)

    # TODO(synk): for real latent resolutions (HW >= 64*64, hidden >= 128) add an
    # HW-tiling grid axis and set vmem_limit_bytes; untiled HW is fine at these sizes.
    out = pl.pallas_call(
        make_denoise_kernel(H, W, hidden, CP, nsteps),
        out_shape=jax.ShapeDtypeStruct((B, CP, HW), jnp.float32),
        grid=(B,),
        in_specs=[
            pl.BlockSpec(memory_space=pltpu.MemorySpace.SMEM),               # scheduler scalars
            pl.BlockSpec((1, CP, HW), lambda b: (b, 0, 0)),                  # initial latents
            pl.BlockSpec((1, nsteps, hidden, HW), lambda b: (b, 0, 0, 0)),   # per-step cond slab
            pl.BlockSpec((9 * CP, HW), lambda b: (0, 0)),                    # boundary masks
            pl.BlockSpec((hidden, 9 * CP), lambda b: (0, 0)),                # conv1 im2col weights
            pl.BlockSpec((9 * CP, hidden), lambda b: (0, 0)),                # conv2 tap weights
            pl.BlockSpec((CP, HW), lambda b: (0, 0)),                        # conv2 bias
        ],
        out_specs=pl.BlockSpec((1, CP, HW), lambda b: (b, 0, 0)),
        compiler_params=pltpu.CompilerParams(
            dimension_semantics=("parallel",)),
    )(scal, x0, addslab, mask9, w1_i2c, w2cat, b2bc)

    return out[:, :C, :].reshape(B, C, H, W)                              # back to NCHW


# ----------------------------------------------------------------------------
# Pure-JAX reference (NCHW, lax.conv) for validation.
# ----------------------------------------------------------------------------
def denoising_loop_reference(initial_latents_nchw, text_embeddings, pooled,
                             time_ids, params, sigmas, timesteps):
    def conv(x_nchw, w9, bias):
        cin, cout = w9.shape[1], w9.shape[2]
        w_oihw = jnp.transpose(w9.reshape(3, 3, cin, cout), (3, 2, 0, 1))
        y = jax.lax.conv_general_dilated(
            x_nchw, w_oihw, window_strides=(1, 1), padding="SAME",
            dimension_numbers=("NCHW", "OIHW", "NCHW"),
            precision=jax.lax.Precision.HIGHEST)
        return y + bias.reshape(1, cout, 1, 1)

    cond = compute_step_conditioning(timesteps, pooled, time_ids, params)
    ctx = jnp.mean(text_embeddings.astype(jnp.float32), axis=1) @ params["wc"]

    init_sigma = jnp.sqrt(sigmas[0] ** 2 + 1.0)
    lat = initial_latents_nchw.astype(jnp.float32) * init_sigma
    for i in range(timesteps.shape[0]):
        sigma, sigma_next = sigmas[i], sigmas[i + 1]
        x = lat / jnp.sqrt(sigma ** 2 + 1.0)
        h = conv(x, params["w1"], params["b1"].reshape(-1))
        h = h + (cond[i] + ctx)[:, :, None, None]
        h = h * jax.nn.sigmoid(h)
        eps = conv(h, params["w2"], params["b2"].reshape(-1))
        lat = lat + eps * (sigma_next - sigma)
    return lat


# TODO(synk): tqdm/print_tensor_stats host-side logging and the torch.Generator
# (unused: Euler step with gamma=0 adds no noise) are intentionally omitted.

if __name__ == "__main__":
    B, C, H, W = 2, 4, 16, 16
    SEQ, DTEXT, DPOOL, TID = 8, 32, 32, 6
    HIDDEN, TEMB, NSTEPS = 32, 32, 4

    key = jax.random.PRNGKey(0)
    k_lat, k_txt, k_pool, k_par = jax.random.split(key, 4)
    initial_latents = jax.random.normal(k_lat, (B, C, H, W), jnp.float32)
    text_embeddings = jax.random.normal(k_txt, (B, SEQ, DTEXT), jnp.float32)
    pooled_prompt_embeds = jax.random.normal(k_pool, (B, DPOOL), jnp.float32)
    add_time_ids = jnp.tile(
        jnp.array([[1024.0, 1024.0, 0.0, 0.0, 1024.0, 1024.0]], jnp.float32), (B, 1))

    params = init_params(k_par, C, HIDDEN, DTEXT, DPOOL, TID, TEMB)

    # Euler-discrete style decreasing sigma schedule (sigma_N = 0) and the
    # matching descending timesteps; init_noise_sigma = sqrt(sigma_max^2 + 1).
    sigmas = jnp.array([14.6146, 7.0, 3.0, 1.0, 0.0], jnp.float32)
    timesteps = jnp.array([999.0, 749.0, 499.0, 249.0], jnp.float32)

    use_bf16 = _default_mxu_bf16()
    out = denoising_loop_pallas(initial_latents, text_embeddings,
                                pooled_prompt_embeds, add_time_ids,
                                params, sigmas, timesteps, mxu_bf16=use_bf16)
    out = jax.block_until_ready(out)

    ref = denoising_loop_reference(initial_latents, text_embeddings,
                                   pooled_prompt_embeds, add_time_ids,
                                   params, sigmas, timesteps)
    ref = jax.block_until_ready(ref)

    abs_err = float(jnp.max(jnp.abs(out - ref)))
    denom = float(jnp.max(jnp.abs(ref))) + 1e-6
    tol = 3e-2 if use_bf16 else 2e-2
    if not np.isfinite(abs_err) or abs_err / denom > tol:
        raise SystemExit(f"mismatch vs reference: max abs err {abs_err}, rel {abs_err / denom}")
    print("KERNEL_OK")
</pallas_src>

<mosaic_0001>
module attributes {stable_mosaic.version = 11 : i64} {
  func.func @kernel(%arg0: i32, %arg1: memref<4x2xf32, #tpu.memory_space<smem>>, %arg2: memref<1x8x256xf32, #tpu.memory_space<vmem>>, %arg3: memref<1x4x32x256xf32, #tpu.memory_space<vmem>>, %arg4: memref<72x256xf32, #tpu.memory_space<vmem>>, %arg5: memref<32x72xf32, #tpu.memory_space<vmem>>, %arg6: memref<72x32xf32, #tpu.memory_space<vmem>>, %arg7: memref<8x256xf32, #tpu.memory_space<vmem>>, %arg8: memref<1x8x256xf32, #tpu.memory_space<vmem>>) attributes {dimension_semantics = [#tpu.dimension_semantics<parallel>], iteration_bounds = array<i64: 2>, scalar_prefetch = 0 : i64, scratch_operands = 0 : i64, tpu.core_type = #tpu.core_type<tc>, window_params = [{transform_indices = @transform_0, window_bounds = array<i64: 4, 2>}, {transform_indices = @transform_1, window_bounds = array<i64: 1, 8, 256>}, {transform_indices = @transform_2, window_bounds = array<i64: 1, 4, 32, 256>}, {pipeline_mode = #tpu.pipeline_mode<synchronous>, transform_indices = @transform_3, window_bounds = array<i64: 72, 256>}, {pipeline_mode = #tpu.pipeline_mode<synchronous>, transform_indices = @transform_4, window_bounds = array<i64: 32, 72>}, {pipeline_mode = #tpu.pipeline_mode<synchronous>, transform_indices = @transform_5, window_bounds = array<i64: 72, 32>}, {pipeline_mode = #tpu.pipeline_mode<synchronous>, transform_indices = @transform_6, window_bounds = array<i64: 8, 256>}, {transform_indices = @transform_7, window_bounds = array<i64: 1, 8, 256>}]} {
    %c0 = arith.constant 0 : index
    %c0_0 = arith.constant 0 : index
    %0 = vector.load %arg4[%c0, %c0_0] : memref<72x256xf32, #tpu.memory_space<vmem>>, vector<72x256xf32>
    %c0_1 = arith.constant 0 : index
    %c0_2 = arith.constant 0 : index
    %1 = vector.load %arg5[%c0_1, %c0_2] : memref<32x72xf32, #tpu.memory_space<vmem>>, vector<32x72xf32>
    %c0_3 = arith.constant 0 : index
    %c0_4 = arith.constant 0 : index
    %2 = vector.load %arg6[%c0_3, %c0_4] : memref<72x32xf32, #tpu.memory_space<vmem>>, vector<72x32xf32>
    %c0_5 = arith.constant 0 : index
    %c0_6 = arith.constant 0 : index
    %3 = vector.load %arg7[%c0_5, %c0_6] : memref<8x256xf32, #tpu.memory_space<vmem>>, vector<8x256xf32>
    %c0_7 = arith.constant 0 : index
    %c0_8 = arith.constant 0 : index
    %c0_9 = arith.constant 0 : index
    %4 = vector.load %arg2[%c0_7, %c0_8, %c0_9] : memref<1x8x256xf32, #tpu.memory_space<vmem>>, vector<1x8x256xf32>
    %5 = vector.shape_cast %4 : vector<1x8x256xf32> to vector<8x256xf32>
    %c0_i32 = arith.constant 0 : i32
    %6 = arith.index_cast %c0_i32 : i32 to index
    %c0_10 = arith.constant 0 : index
    %7 = memref.load %arg1[%6, %c0_10] : memref<4x2xf32, #tpu.memory_space<smem>>
    %8 = arith.index_cast %c0_i32 : i32 to index
    %c1 = arith.constant 1 : index
    %9 = memref.load %arg1[%8, %c1] : memref<4x2xf32, #tpu.memory_space<smem>>
    %10 = vector.broadcast %7 : f32 to vector<8x256xf32>
    %11 = arith.mulf %5, %10 : vector<8x256xf32>
    %c17_i32 = arith.constant 17 : i32
    %12 = tpu.dynamic_rotate %11 by %c17_i32 dim 1 : vector<8x256xf32>, i32 -> vector<8x256xf32>
    %c16_i32 = arith.constant 16 : i32
    %13 = tpu.dynamic_rotate %11 by %c16_i32 dim 1 : vector<8x256xf32>, i32 -> vector<8x256xf32>
    %c15_i32 = arith.constant 15 : i32
    %14 = tpu.dynamic_rotate %11 by %c15_i32 dim 1 : vector<8x256xf32>, i32 -> vector<8x256xf32>
    %c1_i32 = arith.constant 1 : i32
    %15 = tpu.dynamic_rotate %11 by %c1_i32 dim 1 : vector<8x256xf32>, i32 -> vector<8x256xf32>
    %c255_i32 = arith.constant 255 : i32
    %16 = tpu.dynamic_rotate %11 by %c255_i32 dim 1 : vector<8x256xf32>, i32 -> vector<8x256xf32>
    %c241_i32 = arith.constant 241 : i32
    %17 = tpu.dynamic_rotate %11 by %c241_i32 dim 1 : vector<8x256xf32>, i32 -> vector<8x256xf32>
    %c240_i32 = arith.constant 240 : i32
    %18 = tpu.dynamic_rotate %11 by %c240_i32 dim 1 : vector<8x256xf32>, i32 -> vector<8x256xf32>
    %c239_i32 = arith.constant 239 : i32
    %19 = tpu.dynamic_rotate %11 by %c239_i32 dim 1 : vector<8x256xf32>, i32 -> vector<8x256xf32>
    %20 = tpu.concatenate %12, %13, %14, %15, %11, %16, %17, %18, %19 in 0 : vector<8x256xf32>, vector<8x256xf32>, vector<8x256xf32>, vector<8x256xf32>, vector<8x256xf32>, vector<8x256xf32>, vector<8x256xf32>, vector<8x256xf32>, vector<8x256xf32> -> vector<72x256xf32>
    %21 = arith.mulf %20, %0 : vector<72x256xf32>
    %cst = arith.constant dense<0.000000e+00> : vector<32x256xf32>
    %22 = tpu.matmul %1, %21, %cst {dimension_numbers = #tpu.dot_dimension_numbers<[1], [0], [0], [1], [0, 0, 1, 1], [], []>} : vector<32x72xf32>, vector<72x256xf32>, vector<32x256xf32> -> vector<32x256xf32>
    %c0_11 = arith.constant 0 : index
    %23 = arith.index_cast %c0_i32 : i32 to index
    %c0_12 = arith.constant 0 : index
    %c0_13 = arith.constant 0 : index
    %24 = vector.load %arg3[%c0_11, %23, %c0_12, %c0_13] : memref<1x4x32x256xf32, #tpu.memory_space<vmem>>, vector<1x1x32x256xf32>
    %25 = vector.shape_cast %24 : vector<1x1x32x256xf32> to vector<32x256xf32>
    %26 = arith.addf %22, %25 : vector<32x256xf32>
    %27 = arith.negf %26 : vector<32x256xf32>
    %28 = math.exp %27 : vector<32x256xf32>
    %cst_14 = arith.constant 1.000000e+00 : f32
    %29 = vector.broadcast %cst_14 : f32 to vector<32x256xf32>
    %30 = arith.addf %29, %28 : vector<32x256xf32>
    %31 = arith.divf %29, %30 : vector<32x256xf32>
    %32 = arith.mulf %26, %31 : vector<32x256xf32>
    %cst_15 = arith.constant dense<0.000000e+00> : vector<72x256xf32>
    %33 = tpu.matmul %2, %32, %cst_15 {dimension_numbers = #tpu.dot_dimension_numbers<[1], [0], [0], [1], [0, 0, 1, 1], [], []>} : vector<72x32xf32>, vector<32x256xf32>, vector<72x256xf32> -> vector<72x256xf32>
    %34 = vector.extract_strided_slice %33 {offsets = [32, 0], sizes = [8, 256], strides = [1, 1]} : vector<72x256xf32> to vector<8x256xf32>
    %35 = vector.extract_strided_slice %33 {offsets = [0, 0], sizes = [8, 256], strides = [1, 1]} : vector<72x256xf32> to vector<8x256xf32>
    %c17_i32_16 = arith.constant 17 : i32
    %36 = tpu.dynamic_rotate %35 by %c17_i32_16 dim 1 : vector<8x256xf32>, i32 -> vector<8x256xf32>
    %37 = vector.extract_strided_slice %0 {offsets = [0, 0], sizes = [8, 256], strides = [1, 1]} : vector<72x256xf32> to vector<8x256xf32>
    %38 = arith.mulf %36, %37 : vector<8x256xf32>
    %39 = arith.addf %34, %38 : vector<8x256xf32>
    %40 = vector.extract_strided_slice %33 {offsets = [8, 0], sizes = [8, 256], strides = [1, 1]} : vector<72x256xf32> to vector<8x256xf32>
    %c16_i32_17 = arith.constant 16 : i32
    %41 = tpu.dynamic_rotate %40 by %c16_i32_17 dim 1 : vector<8x256xf32>, i32 -> vector<8x256xf32>
    %42 = vector.extract_strided_slice %0 {offsets = [8, 0], sizes = [8, 256], strides = [1, 1]} : vector<72x256xf32> to vector<8x256xf32>
    %43 = arith.mulf %41, %42 : vector<8x256xf32>
    %44 = arith.addf %39, %43 : vector<8x256xf32>
    %45 = vector.extract_strided_slice %33 {offsets = [16, 0], sizes = [8, 256], strides = [1, 1]} : vector<72x256xf32> to vector<8x256xf32>
    %c15_i32_18 = arith.constant 15 : i32
    %46 = tpu.dynamic_rotate %45 by %c15_i32_18 dim 1 : vector<8x256xf32>, i32 -> vector<8x256xf32>
    %47 = vector.extract_strided_slice %0 {offsets = [16, 0], sizes = [8, 256], strides = [1, 1]} : vector<72x256xf32> to vector<8x256xf32>
    %48 = arith.mulf %46, %47 : vector<8x256xf32>
    %49 = arith.addf %44, %48 : vector<8x256xf32>
    %50 = vector.extract_strided_slice %33 {offsets = [24, 0], sizes = [8, 256], strides = [1, 1]} : vector<72x256xf32> to vector<8x256xf32>
    %c1_i32_19 = arith.constant 1 : i32
    %51 = tpu.dynamic_rotate %50 by %c1_i32_19 dim 1 : vector<8x256xf32>, i32 -> vector<8x256xf32>
    %52 = vector.extract_strided_slice %0 {offsets = [24, 0], sizes = [8, 256], strides = [1, 1]} : vector<72x256xf32> to vector<8x256xf32>
    %53 = arith.mulf %51, %52 : vector<8x256xf32>
    %54 = arith.addf %49, %53 : vector<8x256xf32>
    %55 = vector.extract_strided_slice %33 {offsets = [40, 0], sizes = [8, 256], strides = [1, 1]} : vector<72x256xf32> to vector<8x256xf32>
    %c255_i32_20 = arith.constant 255 : i32
    %56 = tpu.dynamic_rotate %55 by %c255_i32_20 dim 1 : vector<8x256xf32>, i32 -> vector<8x256xf32>
    %57 = vector.extract_strided_slice %0 {offsets = [40, 0], sizes = [8, 256], strides = [1, 1]} : vector<72x256xf32> to vector<8x256xf32>
    %58 = arith.mulf %56, %57 : vector<8x256xf32>
    %59 = arith.addf %54, %58 : vector<8x256xf32>
    %60 = vector.extract_strided_slice %33 {offsets = [48, 0], sizes = [8, 256], strides = [1, 1]} : vector<72x256xf32> to vector<8x256xf32>
    %c241_i32_21 = arith.constant 241 : i32
    %61 = tpu.dynamic_rotate %60 by %c241_i32_21 dim 1 : vector<8x256xf32>, i32 -> vector<8x256xf32>
    %62 = vector.extract_strided_slice %0 {offsets = [48, 0], sizes = [8, 256], strides = [1, 1]} : vector<72x256xf32> to vector<8x256xf32>
    %63 = arith.mulf %61, %62 : vector<8x256xf32>
    %64 = arith.addf %59, %63 : vector<8x256xf32>
    %65 = vector.extract_strided_slice %33 {offsets = [56, 0], sizes = [8, 256], strides = [1, 1]} : vector<72x256xf32> to vector<8x256xf32>
    %c240_i32_22 = arith.constant 240 : i32
    %66 = tpu.dynamic_rotate %65 by %c240_i32_22 dim 1 : vector<8x256xf32>, i32 -> vector<8x256xf32>
    %67 = vector.extract_strided_slice %0 {offsets = [56, 0], sizes = [8, 256], strides = [1, 1]} : vector<72x256xf32> to vector<8x256xf32>
    %68 = arith.mulf %66, %67 : vector<8x256xf32>
    %69 = arith.addf %64, %68 : vector<8x256xf32>
    %70 = vector.extract_strided_slice %33 {offsets = [64, 0], sizes = [8, 256], strides = [1, 1]} : vector<72x256xf32> to vector<8x256xf32>
    %c239_i32_23 = arith.constant 239 : i32
    %71 = tpu.dynamic_rotate %70 by %c239_i32_23 dim 1 : vector<8x256xf32>, i32 -> vector<8x256xf32>
    %72 = vector.extract_strided_slice %0 {offsets = [64, 0], sizes = [8, 256], strides = [1, 1]} : vector<72x256xf32> to vector<8x256xf32>
    %73 = arith.mulf %71, %72 : vector<8x256xf32>
    %74 = arith.addf %69, %73 : vector<8x256xf32>
    %75 = arith.addf %74, %3 : vector<8x256xf32>
    %76 = vector.broadcast %9 : f32 to vector<8x256xf32>
    %77 = arith.mulf %75, %76 : vector<8x256xf32>
    %78 = arith.addf %5, %77 : vector<8x256xf32>
    %c1_i32_24 = arith.constant 1 : i32
    %79 = arith.index_cast %c1_i32_24 : i32 to index
    %c0_25 = arith.constant 0 : index
    %80 = memref.load %arg1[%79, %c0_25] : memref<4x2xf32, #tpu.memory_space<smem>>
    %81 = arith.index_cast %c1_i32_24 : i32 to index
    %c1_26 = arith.constant 1 : index
    %82 = memref.load %arg1[%81, %c1_26] : memref<4x2xf32, #tpu.memory_space<smem>>
    %83 = vector.broadcast %80 : f32 to vector<8x256xf32>
    %84 = arith.mulf %78, %83 : vector<8x256xf32>
    %c17_i32_27 = arith.constant 17 : i32
    %85 = tpu.dynamic_rotate %84 by %c17_i32_27 dim 1 : vector<8x256xf32>, i32 -> vector<8x256xf32>
    %c16_i32_28 = arith.constant 16 : i32
    %86 = tpu.dynamic_rotate %84 by %c16_i32_28 dim 1 : vector<8x256xf32>, i32 -> vector<8x256xf32>
    %c15_i32_29 = arith.constant 15 : i32
    %87 = tpu.dynamic_rotate %84 by %c15_i32_29 dim 1 : vector<8x256xf32>, i32 -> vector<8x256xf32>
    %c1_i32_30 = arith.constant 1 : i32
    %88 = tpu.dynamic_rotate %84 by %c1_i32_30 dim 1 : vector<8x256xf32>, i32 -> vector<8x256xf32>
    %c255_i32_31 = arith.constant 255 : i32
    %89 = tpu.dynamic_rotate %84 by %c255_i32_31 dim 1 : vector<8x256xf32>, i32 -> vector<8x256xf32>
    %c241_i32_32 = arith.constant 241 : i32
    %90 = tpu.dynamic_rotate %84 by %c241_i32_32 dim 1 : vector<8x256xf32>, i32 -> vector<8x256xf32>
    %c240_i32_33 = arith.constant 240 : i32
    %91 = tpu.dynamic_rotate %84 by %c240_i32_33 dim 1 : vector<8x256xf32>, i32 -> vector<8x256xf32>
    %c239_i32_34 = arith.constant 239 : i32
    %92 = tpu.dynamic_rotate %84 by %c239_i32_34 dim 1 : vector<8x256xf32>, i32 -> vector<8x256xf32>
    %93 = tpu.concatenate %85, %86, %87, %88, %84, %89, %90, %91, %92 in 0 : vector<8x256xf32>, vector<8x256xf32>, vector<8x256xf32>, vector<8x256xf32>, vector<8x256xf32>, vector<8x256xf32>, vector<8x256xf32>, vector<8x256xf32>, vector<8x256xf32> -> vector<72x256xf32>
    %94 = arith.mulf %93, %0 : vector<72x256xf32>
    %cst_35 = arith.constant dense<0.000000e+00> : vector<32x256xf32>
    %95 = tpu.matmul %1, %94, %cst_35 {dimension_numbers = #tpu.dot_dimension_numbers<[1], [0], [0], [1], [0, 0, 1, 1], [], []>} : vector<32x72xf32>, vector<72x256xf32>, vector<32x256xf32> -> vector<32x256xf32>
    %c0_36 = arith.constant 0 : index
    %96 = arith.index_cast %c1_i32_24 : i32 to index
    %c0_37 = arith.constant 0 : index
    %c0_38 = arith.constant 0 : index
    %97 = vector.load %arg3[%c0_36, %96, %c0_37, %c0_38] : memref<1x4x32x256xf32, #tpu.memory_space<vmem>>, vector<1x1x32x256xf32>
    %98 = vector.shape_cast %97 : vector<1x1x32x256xf32> to vector<32x256xf32>
    %99 = arith.addf %95, %98 : vector<32x256xf32>
    %100 = arith.negf %99 : vector<32x256xf32>
    %101 = math.exp %100 : vector<32x256xf32>
    %cst_39 = arith.constant 1.000000e+00 : f32
    %102 = vector.broadcast %cst_39 : f32 to vector<32x256xf32>
    %103 = arith.addf %102, %101 : vector<32x256xf32>
    %104 = arith.divf %102, %103 : vector<32x256xf32>
    %105 = arith.mulf %99, %104 : vector<32x256xf32>
    %cst_40 = arith.constant dense<0.000000e+00> : vector<72x256xf32>
    %106 = tpu.matmul %2, %105, %cst_40 {dimension_numbers = #tpu.dot_dimension_numbers<[1], [0], [0], [1], [0, 0, 1, 1], [], []>} : vector<72x32xf32>, vector<32x256xf32>, vector<72x256xf32> -> vector<72x256xf32>
    %107 = vector.extract_strided_slice %106 {offsets = [32, 0], sizes = [8, 256], strides = [1, 1]} : vector<72x256xf32> to vector<8x256xf32>
    %108 = vector.extract_strided_slice %106 {offsets = [0, 0], sizes = [8, 256], strides = [1, 1]} : vector<72x256xf32> to vector<8x256xf32>
    %c17_i32_41 = arith.constant 17 : i32
    %109 = tpu.dynamic_rotate %108 by %c17_i32_41 dim 1 : vector<8x256xf32>, i32 -> vector<8x256xf32>
    %110 = vector.extract_strided_slice %0 {offsets = [0, 0], sizes = [8, 256], strides = [1, 1]} : vector<72x256xf32> to vector<8x256xf32>
    %111 = arith.mulf %109, %110 : vector<8x256xf32>
    %112 = arith.addf %107, %111 : vector<8x256xf32>
    %113 = vector.extract_strided_slice %106 {offsets = [8, 0], sizes = [8, 256], strides = [1, 1]} : vector<72x256xf32> to vector<8x256xf32>
    %c16_i32_42 = arith.constant 16 : i32
    %114 = tpu.dynamic_rotate %113 by %c16_i32_42 dim 1 : vector<8x256xf32>, i32 -> vector<8x256xf32>
    %115 = vector.extract_strided_slice %0 {offsets = [8, 0], sizes = [8, 256], strides = [1, 1]} : vector<72x256xf32> to vector<8x256xf32>
    %116 = arith.mulf %114, %115 : vector<8x256xf32>
    %117 = arith.addf %112, %116 : vector<8x256xf32>
    %118 = vector.extract_strided_slice %106 {offsets = [16, 0], sizes = [8, 256], strides = [1, 1]} : vector<72x256xf32> to vector<8x256xf32>
    %c15_i32_43 = arith.constant 15 : i32
    %119 = tpu.dynamic_rotate %118 by %c15_i32_43 dim 1 : vector<8x256xf32>, i32 -> vector<8x256xf32>
    %120 = vector.extract_strided_slice %0 {offsets = [16, 0], sizes = [8, 256], strides = [1, 1]} : vector<72x256xf32> to vector<8x256xf32>
    %121 = arith.mulf %119, %120 : vector<8x256xf32>
    %122 = arith.addf %117, %121 : vector<8x256xf32>
    %123 = vector.extract_strided_slice %106 {offsets = [24, 0], sizes = [8, 256], strides = [1, 1]} : vector<72x256xf32> to vector<8x256xf32>
    %c1_i32_44 = arith.constant 1 : i32
    %124 = tpu.dynamic_rotate %123 by %c1_i32_44 dim 1 : vector<8x256xf32>, i32 -> vector<8x256xf32>
    %125 = vector.extract_strided_slice %0 {offsets = [24, 0], sizes = [8, 256], strides = [1, 1]} : vector<72x256xf32> to vector<8x256xf32>
    %126 = arith.mulf %124, %125 : vector<8x256xf32>
    %127 = arith.addf %122, %126 : vector<8x256xf32>
    %128 = vector.extract_strided_slice %106 {offsets = [40, 0], sizes = [8, 256], strides = [1, 1]} : vector<72x256xf32> to vector<8x256xf32>
    %c255_i32_45 = arith.constant 255 : i32
    %129 = tpu.dynamic_rotate %128 by %c255_i32_45 dim 1 : vector<8x256xf32>, i32 -> vector<8x256xf32>
    %130 = vector.extract_strided_slice %0 {offsets = [40, 0], sizes = [8, 256], strides = [1, 1]} : vector<72x256xf32> to vector<8x256xf32>
    %131 = arith.mulf %129, %130 : vector<8x256xf32>
    %132 = arith.addf %127, %131 : vector<8x256xf32>
    %133 = vector.extract_strided_slice %106 {offsets = [48, 0], sizes = [8, 256], strides = [1, 1]} : vector<72x256xf32> to vector<8x256xf32>
    %c241_i32_46 = arith.constant 241 : i32
    %134 = tpu.dynamic_rotate %133 by %c241_i32_46 dim 1 : vector<8x256xf32>, i32 -> vector<8x256xf32>
    %135 = vector.extract_strided_slice %0 {offsets = [48, 0], sizes = [8, 256], strides = [1, 1]} : vector<72x256xf32> to vector<8x256xf32>
    %136 = arith.mulf %134, %135 : vector<8x256xf32>
    %137 = arith.addf %132, %136 : vector<8x256xf32>
    %138 = vector.extract_strided_slice %106 {offsets = [56, 0], sizes = [8, 256], strides = [1, 1]} : vector<72x256xf32> to vector<8x256xf32>
    %c240_i32_47 = arith.constant 240 : i32
    %139 = tpu.dynamic_rotate %138 by %c240_i32_47 dim 1 : vector<8x256xf32>, i32 -> vector<8x256xf32>
    %140 = vector.extract_strided_slice %0 {offsets = [56, 0], sizes = [8, 256], strides = [1, 1]} : vector<72x256xf32> to vector<8x256xf32>
    %141 = arith.mulf %139, %140 : vector<8x256xf32>
    %142 = arith.addf %137, %141 : vector<8x256xf32>
    %143 = vector.extract_strided_slice %106 {offsets = [64, 0], sizes = [8, 256], strides = [1, 1]} : vector<72x256xf32> to vector<8x256xf32>
    %c239_i32_48 = arith.constant 239 : i32
    %144 = tpu.dynamic_rotate %143 by %c239_i32_48 dim 1 : vector<8x256xf32>, i32 -> vector<8x256xf32>
    %145 = vector.extract_strided_slice %0 {offsets = [64, 0], sizes = [8, 256], strides = [1, 1]} : vector<72x256xf32> to vector<8x256xf32>
    %146 = arith.mulf %144, %145 : vector<8x256xf32>
    %147 = arith.addf %142, %146 : vector<8x256xf32>
    %148 = arith.addf %147, %3 : vector<8x256xf32>
    %149 = vector.broadcast %82 : f32 to vector<8x256xf32>
    %150 = arith.mulf %148, %149 : vector<8x256xf32>
    %151 = arith.addf %78, %150 : vector<8x256xf32>
    %c2_i32 = arith.constant 2 : i32
    %152 = arith.index_cast %c2_i32 : i32 to index
    %c0_49 = arith.constant 0 : index
    %153 = memref.load %arg1[%152, %c0_49] : memref<4x2xf32, #tpu.memory_space<smem>>
    %154 = arith.index_cast %c2_i32 : i32 to index
    %c1_50 = arith.constant 1 : index
    %155 = memref.load %arg1[%154, %c1_50] : memref<4x2xf32, #tpu.memory_space<smem>>
    %156 = vector.broadcast %153 : f32 to vector<8x256xf32>
    %157 = arith.mulf %151, %156 : vector<8x256xf32>
    %c17_i32_51 = arith.constant 17 : i32
    %158 = tpu.dynamic_rotate %157 by %c17_i32_51 dim 1 : vector<8x256xf32>, i32 -> vector<8x256xf32>
    %c16_i32_52 = arith.constant 16 : i32
    %159 = tpu.dynamic_rotate %157 by %c16_i32_52 dim 1 : vector<8x256xf32>, i32 -> vector<8x256xf32>
    %c15_i32_53 = arith.constant 15 : i32
    %160 = tpu.dynamic_rotate %157 by %c15_i32_53 dim 1 : vector<8x256xf32>, i32 -> vector<8x256xf32>
    %c1_i32_54 = arith.constant 1 : i32
    %161 = tpu.dynamic_rotate %157 by %c1_i32_54 dim 1 : vector<8x256xf32>, i32 -> vector<8x256xf32>
    %c255_i32_55 = arith.constant 255 : i32
    %162 = tpu.dynamic_rotate %157 by %c255_i32_55 dim 1 : vector<8x256xf32>, i32 -> vector<8x256xf32>
    %c241_i32_56 = arith.constant 241 : i32
    %163 = tpu.dynamic_rotate %157 by %c241_i32_56 dim 1 : vector<8x256xf32>, i32 -> vector<8x256xf32>
    %c240_i32_57 = arith.constant 240 : i32
    %164 = tpu.dynamic_rotate %157 by %c240_i32_57 dim 1 : vector<8x256xf32>, i32 -> vector<8x256xf32>
    %c239_i32_58 = arith.constant 239 : i32
    %165 = tpu.dynamic_rotate %157 by %c239_i32_58 dim 1 : vector<8x256xf32>, i32 -> vector<8x256xf32>
    %166 = tpu.concatenate %158, %159, %160, %161, %157, %162, %163, %164, %165 in 0 : vector<8x256xf32>, vector<8x256xf32>, vector<8x256xf32>, vector<8x256xf32>, vector<8x256xf32>, vector<8x256xf32>, vector<8x256xf32>, vector<8x256xf32>, vector<8x256xf32> -> vector<72x256xf32>
    %167 = arith.mulf %166, %0 : vector<72x256xf32>
    %cst_59 = arith.constant dense<0.000000e+00> : vector<32x256xf32>
    %168 = tpu.matmul %1, %167, %cst_59 {dimension_numbers = #tpu.dot_dimension_numbers<[1], [0], [0], [1], [0, 0, 1, 1], [], []>} : vector<32x72xf32>, vector<72x256xf32>, vector<32x256xf32> -> vector<32x256xf32>
    %c0_60 = arith.constant 0 : index
    %169 = arith.index_cast %c2_i32 : i32 to index
    %c0_61 = arith.constant 0 : index
    %c0_62 = arith.constant 0 : index
    %170 = vector.load %arg3[%c0_60, %169, %c0_61, %c0_62] : memref<1x4x32x256xf32, #tpu.memory_space<vmem>>, vector<1x1x32x256xf32>
    %171 = vector.shape_cast %170 : vector<1x1x32x256xf32> to vector<32x256xf32>
    %172 = arith.addf %168, %171 : vector<32x256xf32>
    %173 = arith.negf %172 : vector<32x256xf32>
    %174 = math.exp %173 : vector<32x256xf32>
    %cst_63 = arith.constant 1.000000e+00 : f32
    %175 = vector.broadcast %cst_63 : f32 to vector<32x256xf32>
    %176 = arith.addf %175, %174 : vector<32x256xf32>
    %177 = arith.divf %175, %176 : vector<32x256xf32>
    %178 = arith.mulf %172, %177 : vector<32x256xf32>
    %cst_64 = arith.constant dense<0.000000e+00> : vector<72x256xf32>
    %179 = tpu.matmul %2, %178, %cst_64 {dimension_numbers = #tpu.dot_dimension_numbers<[1], [0], [0], [1], [0, 0, 1, 1], [], []>} : vector<72x32xf32>, vector<32x256xf32>, vector<72x256xf32> -> vector<72x256xf32>
    %180 = vector.extract_strided_slice %179 {offsets = [32, 0], sizes = [8, 256], strides = [1, 1]} : vector<72x256xf32> to vector<8x256xf32>
    %181 = vector.extract_strided_slice %179 {offsets = [0, 0], sizes = [8, 256], strides = [1, 1]} : vector<72x256xf32> to vector<8x256xf32>
    %c17_i32_65 = arith.constant 17 : i32
    %182 = tpu.dynamic_rotate %181 by %c17_i32_65 dim 1 : vector<8x256xf32>, i32 -> vector<8x256xf32>
    %183 = vector.extract_strided_slice %0 {offsets = [0, 0], sizes = [8, 256], strides = [1, 1]} : vector<72x256xf32> to vector<8x256xf32>
    %184 = arith.mulf %182, %183 : vector<8x256xf32>
    %185 = arith.addf %180, %184 : vector<8x256xf32>
    %186 = vector.extract_strided_slice %179 {offsets = [8, 0], sizes = [8, 256], strides = [1, 1]} : vector<72x256xf32> to vector<8x256xf32>
    %c16_i32_66 = arith.constant 16 : i32
    %187 = tpu.dynamic_rotate %186 by %c16_i32_66 dim 1 : vector<8x256xf32>, i32 -> vector<8x256xf32>
    %188 = vector.extract_strided_slice %0 {offsets = [8, 0], sizes = [8, 256], strides = [1, 1]} : vector<72x256xf32> to vector<8x256xf32>
    %189 = arith.mulf %187, %188 : vector<8x256xf32>
    %190 = arith.addf %185, %189 : vector<8x256xf32>
    %191 = vector.extract_strided_slice %179 {offsets = [16, 0], sizes = [8, 256], strides = [1, 1]} : vector<72x256xf32> to vector<8x256xf32>
    %c15_i32_67 = arith.constant 15 : i32
    %192 = tpu.dynamic_rotate %191 by %c15_i32_67 dim 1 : vector<8x256xf32>, i32 -> vector<8x256xf32>
    %193 = vector.extract_strided_slice %0 {offsets = [16, 0], sizes = [8, 256], strides = [1, 1]} : vector<72x256xf32> to vector<8x256xf32>
    %194 = arith.mulf %192, %193 : vector<8x256xf32>
    %195 = arith.addf %190, %194 : vector<8x256xf32>
    %196 = vector.extract_strided_slice %179 {offsets = [24, 0], sizes = [8, 256], strides = [1, 1]} : vector<72x256xf32> to vector<8x256xf32>
    %c1_i32_68 = arith.constant 1 : i32
    %197 = tpu.dynamic_rotate %196 by %c1_i32_68 dim 1 : vector<8x256xf32>, i32 -> vector<8x256xf32>
    %198 = vector.extract_strided_slice %0 {offsets = [24, 0], sizes = [8, 256], strides = [1, 1]} : vector<72x256xf32> to vector<8x256xf32>
    %199 = arith.mulf %197, %198 : vector<8x256xf32>
    %200 = arith.addf %195, %199 : vector<8x256xf32>
    %201 = vector.extract_strided_slice %179 {offsets = [40, 0], sizes = [8, 256], strides = [1, 1]} : vector<72x256xf32> to vector<8x256xf32>
    %c255_i32_69 = arith.constant 255 : i32
    %202 = tpu.dynamic_rotate %201 by %c255_i32_69 dim 1 : vector<8x256xf32>, i32 -> vector<8x256xf32>
    %203 = vector.extract_strided_slice %0 {offsets = [40, 0], sizes = [8, 256], strides = [1, 1]} : vector<72x256xf32> to vector<8x256xf32>
    %204 = arith.mulf %202, %203 : vector<8x256xf32>
    %205 = arith.addf %200, %204 : vector<8x256xf32>
    %206 = vector.extract_strided_slice %179 {offsets = [48, 0], sizes = [8, 256], strides = [1, 1]} : vector<72x256xf32> to vector<8x256xf32>
    %c241_i32_70 = arith.constant 241 : i32
    %207 = tpu.dynamic_rotate %206 by %c241_i32_70 dim 1 : vector<8x256xf32>, i32 -> vector<8x256xf32>
    %208 = vector.extract_strided_slice %0 {offsets = [48, 0], sizes = [8, 256], strides = [1, 1]} : vector<72x256xf32> to vector<8x256xf32>
    %209 = arith.mulf %207, %208 : vector<8x256xf32>
    %210 = arith.addf %205, %209 : vector<8x256xf32>
    %211 = vector.extract_strided_slice %179 {offsets = [56, 0], sizes = [8, 256], strides = [1, 1]} : vector<72x256xf32> to vector<8x256xf32>
    %c240_i32_71 = arith.constant 240 : i32
    %212 = tpu.dynamic_rotate %211 by %c240_i32_71 dim 1 : vector<8x256xf32>, i32 -> vector<8x256xf32>
    %213 = vector.extract_strided_slice %0 {offsets = [56, 0], sizes = [8, 256], strides = [1, 1]} : vector<72x256xf32> to vector<8x256xf32>
    %214 = arith.mulf %212, %213 : vector<8x256xf32>
    %215 = arith.addf %210, %214 : vector<8x256xf32>
    %216 = vector.extract_strided_slice %179 {offsets = [64, 0], sizes = [8, 256], strides = [1, 1]} : vector<72x256xf32> to vector<8x256xf32>
    %c239_i32_72 = arith.constant 239 : i32
    %217 = tpu.dynamic_rotate %216 by %c239_i32_72 dim 1 : vector<8x256xf32>, i32 -> vector<8x256xf32>
    %218 = vector.extract_strided_slice %0 {offsets = [64, 0], sizes = [8, 256], strides = [1, 1]} : vector<72x256xf32> to vector<8x256xf32>
    %219 = arith.mulf %217, %218 : vector<8x256xf32>
    %220 = arith.addf %215, %219 : vector<8x256xf32>
    %221 = arith.addf %220, %3 : vector<8x256xf32>
    %222 = vector.broadcast %155 : f32 to vector<8x256xf32>
    %223 = arith.mulf %221, %222 : vector<8x256xf32>
    %224 = arith.addf %151, %223 : vector<8x256xf32>
    %c3_i32 = arith.constant 3 : i32
    %225 = arith.index_cast %c3_i32 : i32 to index
    %c0_73 = arith.constant 0 : index
    %226 = memref.load %arg1[%225, %c0_73] : memref<4x2xf32, #tpu.memory_space<smem>>
    %227 = arith.index_cast %c3_i32 : i32 to index
    %c1_74 = arith.constant 1 : index
    %228 = memref.load %arg1[%227, %c1_74] : memref<4x2xf32, #tpu.memory_space<smem>>
    %229 = vector.broadcast %226 : f32 to vector<8x256xf32>
    %230 = arith.mulf %224, %229 : vector<8x256xf32>
    %c17_i32_75 = arith.constant 17 : i32
    %231 = tpu.dynamic_rotate %230 by %c17_i32_75 dim 1 : vector<8x256xf32>, i32 -> vector<8x256xf32>
    %c16_i32_76 = arith.constant 16 : i32
    %232 = tpu.dynamic_rotate %230 by %c16_i32_76 dim 1 : vector<8x256xf32>, i32 -> vector<8x256xf32>
    %c15_i32_77 = arith.constant 15 : i32
    %233 = tpu.dynamic_rotate %230 by %c15_i32_77 dim 1 : vector<8x256xf32>, i32 -> vector<8x256xf32>
    %c1_i32_78 = arith.constant 1 : i32
    %234 = tpu.dynamic_rotate %230 by %c1_i32_78 dim 1 : vector<8x256xf32>, i32 -> vector<8x256xf32>
    %c255_i32_79 = arith.constant 255 : i32
    %235 = tpu.dynamic_rotate %230 by %c255_i32_79 dim 1 : vector<8x256xf32>, i32 -> vector<8x256xf32>
    %c241_i32_80 = arith.constant 241 : i32
    %236 = tpu.dynamic_rotate %230 by %c241_i32_80 dim 1 : vector<8x256xf32>, i32 -> vector<8x256xf32>
    %c240_i32_81 = arith.constant 240 : i32
    %237 = tpu.dynamic_rotate %230 by %c240_i32_81 dim 1 : vector<8x256xf32>, i32 -> vector<8x256xf32>
    %c239_i32_82 = arith.constant 239 : i32
    %238 = tpu.dynamic_rotate %230 by %c239_i32_82 dim 1 : vector<8x256xf32>, i32 -> vector<8x256xf32>
    %239 = tpu.concatenate %231, %232, %233, %234, %230, %235, %236, %237, %238 in 0 : vector<8x256xf32>, vector<8x256xf32>, vector<8x256xf32>, vector<8x256xf32>, vector<8x256xf32>, vector<8x256xf32>, vector<8x256xf32>, vector<8x256xf32>, vector<8x256xf32> -> vector<72x256xf32>
    %240 = arith.mulf %239, %0 : vector<72x256xf32>
    %cst_83 = arith.constant dense<0.000000e+00> : vector<32x256xf32>
    %241 = tpu.matmul %1, %240, %cst_83 {dimension_numbers = #tpu.dot_dimension_numbers<[1], [0], [0], [1], [0, 0, 1, 1], [], []>} : vector<32x72xf32>, vector<72x256xf32>, vector<32x256xf32> -> vector<32x256xf32>
    %c0_84 = arith.constant 0 : index
    %242 = arith.index_cast %c3_i32 : i32 to index
    %c0_85 = arith.constant 0 : index
    %c0_86 = arith.constant 0 : index
    %243 = vector.load %arg3[%c0_84, %242, %c0_85, %c0_86] : memref<1x4x32x256xf32, #tpu.memory_space<vmem>>, vector<1x1x32x256xf32>
    %244 = vector.shape_cast %243 : vector<1x1x32x256xf32> to vector<32x256xf32>
    %245 = arith.addf %241, %244 : vector<32x256xf32>
    %246 = arith.negf %245 : vector<32x256xf32>
    %247 = math.exp %246 : vector<32x256xf32>
    %cst_87 = arith.constant 1.000000e+00 : f32
    %248 = vector.broadcast %cst_87 : f32 to vector<32x256xf32>
    %249 = arith.addf %248, %247 : vector<32x256xf32>
    %250 = arith.divf %248, %249 : vector<32x256xf32>
    %251 = arith.mulf %245, %250 : vector<32x256xf32>
    %cst_88 = arith.constant dense<0.000000e+00> : vector<72x256xf32>
    %252 = tpu.matmul %2, %251, %cst_88 {dimension_numbers = #tpu.dot_dimension_numbers<[1], [0], [0], [1], [0, 0, 1, 1], [], []>} : vector<72x32xf32>, vector<32x256xf32>, vector<72x256xf32> -> vector<72x256xf32>
    %253 = vector.extract_strided_slice %252 {offsets = [32, 0], sizes = [8, 256], strides = [1, 1]} : vector<72x256xf32> to vector<8x256xf32>
    %254 = vector.extract_strided_slice %252 {offsets = [0, 0], sizes = [8, 256], strides = [1, 1]} : vector<72x256xf32> to vector<8x256xf32>
    %c17_i32_89 = arith.constant 17 : i32
    %255 = tpu.dynamic_rotate %254 by %c17_i32_89 dim 1 : vector<8x256xf32>, i32 -> vector<8x256xf32>
    %256 = vector.extract_strided_slice %0 {offsets = [0, 0], sizes = [8, 256], strides = [1, 1]} : vector<72x256xf32> to vector<8x256xf32>
    %257 = arith.mulf %255, %256 : vector<8x256xf32>
    %258 = arith.addf %253, %257 : vector<8x256xf32>
    %259 = vector.extract_strided_slice %252 {offsets = [8, 0], sizes = [8, 256], strides = [1, 1]} : vector<72x256xf32> to vector<8x256xf32>
    %c16_i32_90 = arith.constant 16 : i32
    %260 = tpu.dynamic_rotate %259 by %c16_i32_90 dim 1 : vector<8x256xf32>, i32 -> vector<8x256xf32>
    %261 = vector.extract_strided_slice %0 {offsets = [8, 0], sizes = [8, 256], strides = [1, 1]} : vector<72x256xf32> to vector<8x256xf32>
    %262 = arith.mulf %260, %261 : vector<8x256xf32>
    %263 = arith.addf %258, %262 : vector<8x256xf32>
    %264 = vector.extract_strided_slice %252 {offsets = [16, 0], sizes = [8, 256], strides = [1, 1]} : vector<72x256xf32> to vector<8x256xf32>
    %c15_i32_91 = arith.constant 15 : i32
    %265 = tpu.dynamic_rotate %264 by %c15_i32_91 dim 1 : vector<8x256xf32>, i32 -> vector<8x256xf32>
    %266 = vector.extract_strided_slice %0 {offsets = [16, 0], sizes = [8, 256], strides = [1, 1]} : vector<72x256xf32> to vector<8x256xf32>
    %267 = arith.mulf %265, %266 : vector<8x256xf32>
    %268 = arith.addf %263, %267 : vector<8x256xf32>
    %269 = vector.extract_strided_slice %252 {offsets = [24, 0], sizes = [8, 256], strides = [1, 1]} : vector<72x256xf32> to vector<8x256xf32>
    %c1_i32_92 = arith.constant 1 : i32
    %270 = tpu.dynamic_rotate %269 by %c1_i32_92 dim 1 : vector<8x256xf32>, i32 -> vector<8x256xf32>
    %271 = vector.extract_strided_slice %0 {offsets = [24, 0], sizes = [8, 256], strides = [1, 1]} : vector<72x256xf32> to vector<8x256xf32>
    %272 = arith.mulf %270, %271 : vector<8x256xf32>
    %273 = arith.addf %268, %272 : vector<8x256xf32>
    %274 = vector.extract_strided_slice %252 {offsets = [40, 0], sizes = [8, 256], strides = [1, 1]} : vector<72x256xf32> to vector<8x256xf32>
    %c255_i32_93 = arith.constant 255 : i32
    %275 = tpu.dynamic_rotate %274 by %c255_i32_93 dim 1 : vector<8x256xf32>, i32 -> vector<8x256xf32>
    %276 = vector.extract_strided_slice %0 {offsets = [40, 0], sizes = [8, 256], strides = [1, 1]} : vector<72x256xf32> to vector<8x256xf32>
    %277 = arith.mulf %275, %276 : vector<8x256xf32>
    %278 = arith.addf %273, %277 : vector<8x256xf32>
    %279 = vector.extract_strided_slice %252 {offsets = [48, 0], sizes = [8, 256], strides = [1, 1]} : vector<72x256xf32> to vector<8x256xf32>
    %c241_i32_94 = arith.constant 241 : i32
    %280 = tpu.dynamic_rotate %279 by %c241_i32_94 dim 1 : vector<8x256xf32>, i32 -> vector<8x256xf32>
    %281 = vector.extract_strided_slice %0 {offsets = [48, 0], sizes = [8, 256], strides = [1, 1]} : vector<72x256xf32> to vector<8x256xf32>
    %282 = arith.mulf %280, %281 : vector<8x256xf32>
    %283 = arith.addf %278, %282 : vector<8x256xf32>
    %284 = vector.extract_strided_slice %252 {offsets = [56, 0], sizes = [8, 256], strides = [1, 1]} : vector<72x256xf32> to vector<8x256xf32>
    %c240_i32_95 = arith.constant 240 : i32
    %285 = tpu.dynamic_rotate %284 by %c240_i32_95 dim 1 : vector<8x256xf32>, i32 -> vector<8x256xf32>
    %286 = vector.extract_strided_slice %0 {offsets = [56, 0], sizes = [8, 256], strides = [1, 1]} : vector<72x256xf32> to vector<8x256xf32>
    %287 = arith.mulf %285, %286 : vector<8x256xf32>
    %288 = arith.addf %283, %287 : vector<8x256xf32>
    %289 = vector.extract_strided_slice %252 {offsets = [64, 0], sizes = [8, 256], strides = [1, 1]} : vector<72x256xf32> to vector<8x256xf32>
    %c239_i32_96 = arith.constant 239 : i32
    %290 = tpu.dynamic_rotate %289 by %c239_i32_96 dim 1 : vector<8x256xf32>, i32 -> vector<8x256xf32>
    %291 = vector.extract_strided_slice %0 {offsets = [64, 0], sizes = [8, 256], strides = [1, 1]} : vector<72x256xf32> to vector<8x256xf32>
    %292 = arith.mulf %290, %291 : vector<8x256xf32>
    %293 = arith.addf %288, %292 : vector<8x256xf32>
    %294 = arith.addf %293, %3 : vector<8x256xf32>
    %295 = vector.broadcast %228 : f32 to vector<8x256xf32>
    %296 = arith.mulf %294, %295 : vector<8x256xf32>
    %297 = arith.addf %224, %296 : vector<8x256xf32>
    %c4_i32 = arith.constant 4 : i32
    %c0_97 = arith.constant 0 : index
    %c0_98 = arith.constant 0 : index
    %c0_99 = arith.constant 0 : index
    %298 = vector.load %arg8[%c0_97, %c0_98, %c0_99] : memref<1x8x256xf32, #tpu.memory_space<vmem>>, vector<1x8x256xf32>
    %299 = vector.shape_cast %298 : vector<1x8x256xf32> to vector<8x256xf32>
    %300 = vector.shape_cast %297 : vector<8x256xf32> to vector<1x8x256xf32>
    tpu.vector_store %arg8[%c0_97, %c0_98, %c0_99], %300 {strides = array<i32>} : memref<1x8x256xf32, #tpu.memory_space<vmem>>, vector<1x8x256xf32>,
    return
  }
  func.func @transform_0(%arg0: i32) -> (i32, i32) {
    %c0_i32 = arith.constant 0 : i32
    %c0_i32_0 = arith.constant 0 : i32
    %c0_i32_1 = arith.constant 0 : i32
    return %c0_i32, %c0_i32_0 : i32, i32
  }
  func.func @transform_1(%arg0: i32) -> (i32, i32, i32) {
    %c0_i32 = arith.constant 0 : i32
    %c0_i32_0 = arith.constant 0 : i32
    %c0_i32_1 = arith.constant 0 : i32
    return %arg0, %c0_i32, %c0_i32_0 : i32, i32, i32
  }
  func.func @transform_2(%arg0: i32) -> (i32, i32, i32, i32) {
    %c0_i32 = arith.constant 0 : i32
    %c0_i32_0 = arith.constant 0 : i32
    %c0_i32_1 = arith.constant 0 : i32
    %c0_i32_2 = arith.constant 0 : i32
    return %arg0, %c0_i32, %c0_i32_0, %c0_i32_1 : i32, i32, i32, i32
  }
  func.func @transform_3(%arg0: i32) -> (i32, i32) {
    %c0_i32 = arith.constant 0 : i32
    %c0_i32_0 = arith.constant 0 : i32
    %c0_i32_1 = arith.constant 0 : i32
    return %c0_i32, %c0_i32_0 : i32, i32
  }
  func.func @transform_4(%arg0: i32) -> (i32, i32) {
    %c0_i32 = arith.constant 0 : i32
    %c0_i32_0 = arith.constant 0 : i32
    %c0_i32_1 = arith.constant 0 : i32
    return %c0_i32, %c0_i32_0 : i32, i32
  }
  func.func @transform_5(%arg0: i32) -> (i32, i32) {
    %c0_i32 = arith.constant 0 : i32
    %c0_i32_0 = arith.constant 0 : i32
    %c0_i32_1 = arith.constant 0 : i32
    return %c0_i32, %c0_i32_0 : i32, i32
  }
  func.func @transform_6(%arg0: i32) -> (i32, i32) {
    %c0_i32 = arith.constant 0 : i32
    %c0_i32_0 = arith.constant 0 : i32
    %c0_i32_1 = arith.constant 0 : i32
    return %c0_i32, %c0_i32_0 : i32, i32
  }
  func.func @transform_7(%arg0: i32) -> (i32, i32, i32) {
    %c0_i32 = arith.constant 0 : i32
    %c0_i32_0 = arith.constant 0 : i32
    %c0_i32_1 = arith.constant 0 : i32
    return %arg0, %c0_i32, %c0_i32_0 : i32, i32, i32
  }
}

</mosaic_0001>

<llo_original>
// kernel: tpu_custom_call.1
$region0: #{tpu_custom_call.1}
  #allocation0 [shape = 'u32[]', space=smem, size = 0x4, offset = 0x4, fixed_abs, tag = 'smem constant byte address 0x4 - core index']
  #allocation1 [shape = 'u32[144,128]{1,0:T(1,128)}', space=vmem, size = 0x12000, scoped, tag = 'internal scratch']
  %s0 = inlined_call_operand.vmem [shape: f32[4,2], index: 0, kind: input, shape index: {}]
  %s1 = inlined_call_operand.vmem [shape: f32[2,8,256], index: 1, kind: input, shape index: {}]
  %s2 = inlined_call_operand.hbm [shape: f32[2,4,32,256], index: 2, kind: input, shape index: {}]
  %s3 = inlined_call_operand.hbm [shape: f32[72,256], index: 3, kind: input, shape index: {}]
  %s4 = inlined_call_operand.vmem [shape: f32[32,72], index: 4, kind: input, shape index: {}]
  %s5 = inlined_call_operand.vmem [shape: f32[72,32], index: 5, kind: input, shape index: {}]
  %s6 = inlined_call_operand.vmem [shape: f32[8,256], index: 6, kind: input, shape index: {}]
  %s7 = inlined_call_operand.hbm [shape: f32[2,8,256], index: 7, kind: output, shape index: {}]
  %s8 = sld [smem:[#allocation0]]
  $region73: #{tpu_custom_call.1} parent=0
    _
  %s10 = ssub.s32 1, %s8
  %s11 = scalar_select 0, %s10, %s8
  $region1: #{tpu_custom_call.1} parent=0
    #allocation2 [shape = 'u8[2048]{0}', space=smem, size = 0x800, scoped, tag = 'input window, operand 0, single buffered']
    #allocation3 [shape = 's32[2]{0}', space=sflag, size = 0x8, scoped, tag = 'scoped memory for tpu_custom_call.1']
    #allocation4 [shape = 's32[2]{0}', space=sflag, size = 0x8, scoped, tag = 'scoped memory for tpu_custom_call.1']
    #allocation5 [shape = 's32[2]{0}', space=sflag, size = 0x8, scoped, tag = 'scoped memory for tpu_custom_call.1']
    #allocation6 [shape = 'u8[262144]{0}', space=vmem, size = 0x40000, scoped, tag = 'input window, operand 2']
    #allocation7 [shape = 'u8[73728]{0}', space=vmem, size = 0x12000, scoped, tag = 'input window, operand 3, single buffered']
    #allocation8 [shape = 's32[1]{0}', space=sflag, size = 0x4, scoped, tag = 'scoped memory for tpu_custom_call.1']
    #allocation9 [shape = 'u8[16384]{0}', space=vmem, size = 0x4000, scoped, tag = 'output window, operand 0']
    %12 = vsyncpa [#allocation5], 0
    %13 = vsyncpa [#allocation3], 0
    %s14 = scalar_lea.sflag [#allocation3], 1
    %15 = vsyncpa %s14, 0
    %16 = vsyncpa [#allocation8], 0
    %17 = vsyncpa [#allocation4], 0
    %s18 = scalar_lea.sflag [#allocation4], 1
    %19 = vsyncpa %s18, 0
    loop: start=0, step=1, limit=4
    $region2: #{tpu_custom_call.1} parent=1 // loop_pre_header
      _
    $region3: #{tpu_custom_call.1} parent=1 // loop_header
      %s21 = sphi 0, %s25
      %p22 = scmp.ge.s32.totalorder %s21, 4
      %s29 = sphi 0, %s29
      %s31 = sphi 0, %s29
      %s32 = sphi 0, %s31
      %s46 = sphi 0, %s32
      %s52 = sphi 0, %s54
      %s55 = sphi 0, %s52
      %s56 = sphi 0, %s55
      %s72 = sphi 0, %s56
      %s78 = sphi 0, %s80
      %s81 = sphi 0, %s78
      %s82 = sphi 0, %s81
      %s98 = sphi 0, %s82
      %s102 = sphi 0, %s102
      %s104 = sphi 0, %s102
      %s105 = sphi 0, %s104
      %s119 = sphi 0, %s105
      %s123 = sphi 0, %s123
      %s125 = sphi 0, %s123
      %s126 = sphi 0, %s125
      %s140 = sphi 0, %s126
      %s144 = sphi 0, %s144
      %s146 = sphi 0, %s144
      %s147 = sphi 0, %s146
      %s161 = sphi 0, %s147
      %s165 = sphi 0, %s165
      %s167 = sphi 0, %s165
      %s168 = sphi 0, %s167
      %s182 = sphi 0, %s168
      %s188 = sphi 0, %s190
      %s191 = sphi 0, %s188
      %s192 = sphi 0, %s191
      %s208 = sphi 0, %s192
    $region4: #{tpu_custom_call.1} parent=1 // loop_header_branch
      %24 = sbr.rel (%p22) target = $region8
    $region5: #{tpu_custom_call.1} parent=1 // loop_body
      %s26 = ssub.s32 %s21, 1
      %s27 = ssub.s32 %s21, 2
      %s28 = sadd.s32 %s21, 1
      %s30 = sadd.s32 %s29, 1
      %p33 = scmp.eq.s32.totalorder %s21, 1
      %p34 = scmp.ne.s32.totalorder %s29, %s31
      %p35 = scmp.eq.s32.totalorder %s21, 0
      %p36 = por %p34, %p35
      %p37 = scmp.ne.s32.totalorder %s29, %s31
      %p38 = scmp.eq.s32.totalorder %s26, 1
      %p39 = por %p37, %p38
      %p40 = scmp.ne.s32.totalorder %s31, %s32
      %p41 = scmp.eq.s32.totalorder %s26, 0
      %p42 = por %p40, %p41
      %p43 = scmp.ne.s32.totalorder %s31, %s32
      %p44 = scmp.eq.s32.totalorder %s27, 1
      %p45 = por %p43, %p44
      %p47 = scmp.ne.s32.totalorder %s32, %s46
      %p48 = scmp.eq.s32.totalorder %s27, 0
      %p49 = por %p47, %p48
      %s50 = ssub.s32 %s21, %s28
      %p51 = scmp.eq.s32.totalorder %s50, 0
      %s53 = sadd.s32 %s52, 1
      %s54 = scalar_select %p51, %s52, %s53
      %p57 = pneg %p51
      %p58 = scmp.eq.s32.totalorder %s21, 1
      %p59 = por %p57, %p58
      %p60 = scmp.ne.s32.totalorder %s52, %s55
      %p61 = scmp.eq.s32.totalorder %s21, 0
      %p62 = por %p60, %p61
      %p63 = scmp.ne.s32.totalorder %s52, %s55
      %p64 = scmp.eq.s32.totalorder %s26, 1
      %p65 = por %p63, %p64
      %p66 = scmp.ne.s32.totalorder %s55, %s56
      %p67 = scmp.eq.s32.totalorder %s26, 0
      %p68 = por %p66, %p67
      %p69 = scmp.ne.s32.totalorder %s55, %s56
      %p70 = scmp.eq.s32.totalorder %s27, 1
      %p71 = por %p69, %p70
      %p73 = scmp.ne.s32.totalorder %s56, %s72
      %p74 = scmp.eq.s32.totalorder %s27, 0
      %p75 = por %p73, %p74
      %s76 = ssub.s32 %s21, %s28
      %p77 = scmp.eq.s32.totalorder %s76, 0
      %s79 = sadd.s32 %s78, 1
      %s80 = scalar_select %p77, %s78, %s79
      %p83 = pneg %p77
      %p84 = scmp.eq.s32.totalorder %s21, 1
      %p85 = por %p83, %p84
      %p86 = scmp.ne.s32.totalorder %s78, %s81
      %p87 = scmp.eq.s32.totalorder %s21, 0
      %p88 = por %p86, %p87
      %p89 = scmp.ne.s32.totalorder %s78, %s81
      %p90 = scmp.eq.s32.totalorder %s26, 1
      %p91 = por %p89, %p90
      %p92 = scmp.ne.s32.totalorder %s81, %s82
      %p93 = scmp.eq.s32.totalorder %s26, 0
      %p94 = por %p92, %p93
      %p95 = scmp.ne.s32.totalorder %s81, %s82
      %p96 = scmp.eq.s32.totalorder %s27, 1
      %p97 = por %p95, %p96
      %p99 = scmp.ne.s32.totalorder %s82, %s98
      %p100 = scmp.eq.s32.totalorder %s27, 0
      %p101 = por %p99, %p100
      %s103 = sadd.s32 %s102, 1
      %p106 = scmp.eq.s32.totalorder %s21, 1
      %p107 = scmp.ne.s32.totalorder %s102, %s104
      %p108 = scmp.eq.s32.totalorder %s21, 0
      %p109 = por %p107, %p108
      %p110 = scmp.ne.s32.totalorder %s102, %s104
      %p111 = scmp.eq.s32.totalorder %s26, 1
      %p112 = por %p110, %p111
      %p113 = scmp.ne.s32.totalorder %s104, %s105
      %p114 = scmp.eq.s32.totalorder %s26, 0
      %p115 = por %p113, %p114
      %p116 = scmp.ne.s32.totalorder %s104, %s105
      %p117 = scmp.eq.s32.totalorder %s27, 1
      %p118 = por %p116, %p117
      %p120 = scmp.ne.s32.totalorder %s105, %s119
      %p121 = scmp.eq.s32.totalorder %s27, 0
      %p122 = por %p120, %p121
      %s124 = sadd.s32 %s123, 1
      %p127 = scmp.eq.s32.totalorder %s21, 1
      %p128 = scmp.ne.s32.totalorder %s123, %s125
      %p129 = scmp.eq.s32.totalorder %s21, 0
      %p130 = por %p128, %p129
      %p131 = scmp.ne.s32.totalorder %s123, %s125
      %p132 = scmp.eq.s32.totalorder %s26, 1
      %p133 = por %p131, %p132
      %p134 = scmp.ne.s32.totalorder %s125, %s126
      %p135 = scmp.eq.s32.totalorder %s26, 0
      %p136 = por %p134, %p135
      %p137 = scmp.ne.s32.totalorder %s125, %s126
      %p138 = scmp.eq.s32.totalorder %s27, 1
      %p139 = por %p137, %p138
      %p141 = scmp.ne.s32.totalorder %s126, %s140
      %p142 = scmp.eq.s32.totalorder %s27, 0
      %p143 = por %p141, %p142
      %s145 = sadd.s32 %s144, 1
      %p148 = scmp.eq.s32.totalorder %s21, 1
      %p149 = scmp.ne.s32.totalorder %s144, %s146
      %p150 = scmp.eq.s32.totalorder %s21, 0
      %p151 = por %p149, %p150
      %p152 = scmp.ne.s32.totalorder %s144, %s146
      %p153 = scmp.eq.s32.totalorder %s26, 1
      %p154 = por %p152, %p153
      %p155 = scmp.ne.s32.totalorder %s146, %s147
      %p156 = scmp.eq.s32.totalorder %s26, 0
      %p157 = por %p155, %p156
      %p158 = scmp.ne.s32.totalorder %s146, %s147
      %p159 = scmp.eq.s32.totalorder %s27, 1
      %p160 = por %p158, %p159
      %p162 = scmp.ne.s32.totalorder %s147, %s161
      %p163 = scmp.eq.s32.totalorder %s27, 0
      %p164 = por %p162, %p163
      %s166 = sadd.s32 %s165, 1
      %p169 = scmp.eq.s32.totalorder %s21, 1
      %p170 = scmp.ne.s32.totalorder %s165, %s167
      %p171 = scmp.eq.s32.totalorder %s21, 0
      %p172 = por %p170, %p171
      %p173 = scmp.ne.s32.totalorder %s165, %s167
      %p174 = scmp.eq.s32.totalorder %s26, 1
      %p175 = por %p173, %p174
      %p176 = scmp.ne.s32.totalorder %s167, %s168
      %p177 = scmp.eq.s32.totalorder %s26, 0
      %p178 = por %p176, %p177
      %p179 = scmp.ne.s32.totalorder %s167, %s168
      %p180 = scmp.eq.s32.totalorder %s27, 1
      %p181 = por %p179, %p180
      %p183 = scmp.ne.s32.totalorder %s168, %s182
      %p184 = scmp.eq.s32.totalorder %s27, 0
      %p185 = por %p183, %p184
      %s186 = ssub.s32 %s21, %s28
      %p187 = scmp.eq.s32.totalorder %s186, 0
      %s189 = sadd.s32 %s188, 1
      %s190 = scalar_select %p187, %s188, %s189
      %p193 = pneg %p187
      %p194 = scmp.eq.s32.totalorder %s21, 1
      %p195 = por %p193, %p194
      %p196 = scmp.ne.s32.totalorder %s188, %s191
      %p197 = scmp.eq.s32.totalorder %s21, 0
      %p198 = por %p196, %p197
      %p199 = scmp.ne.s32.totalorder %s188, %s191
      %p200 = scmp.eq.s32.totalorder %s26, 1
      %p201 = por %p199, %p200
      %p202 = scmp.ne.s32.totalorder %s191, %s192
      %p203 = scmp.eq.s32.totalorder %s26, 0
      %p204 = por %p202, %p203
      %p205 = scmp.ne.s32.totalorder %s191, %s192
      %p206 = scmp.eq.s32.totalorder %s27, 1
      %p207 = por %p205, %p206
      %p209 = scmp.ne.s32.totalorder %s192, %s208
      %p210 = scmp.eq.s32.totalorder %s27, 0
      %p211 = por %p209, %p210
      %p212 = scmp.le.s32.totalorder 1, %s21
      %p213 = scmp.lt.s32.totalorder %s21, 3
      %p214 = pnand %p212, %p213
      %p215 = pneg %p214
      // Predicated region
      $region9: #{tpu_custom_call.1} parent=5 // pred_check
        _
      $region10: #{tpu_custom_call.1} parent=5 // pred_check_branch
        %217 = sbr.rel (%p214) target = $region12
      $region11: #{tpu_custom_call.1} parent=5 // pred_region
        %s218 = ssub.s32 %s21, 1
        // Predicated region
        $region13: #{tpu_custom_call.1} parent=11 // pred_check
          %p219 = pneg %p42
        $region14: #{tpu_custom_call.1} parent=11 // pred_check_branch
          %221 = sbr.rel (%p219) target = $region16
        $region15: #{tpu_custom_call.1} parent=11 // pred_region
          %s223 = ssub.s32 64, 64
          %224 = vsyncadd [#allocation5], %s223
          %s226 = sshll.u32 %s0, 4
          %s227 = int_to_ptr.vmem [resolvable:$true] %s226
          %229 = dma.vmem_to_smem %s227, 64, [#allocation2], [#allocation5]
        $region16: #{tpu_custom_call.1} parent=11 // pred_fallthru
          _
        // Predicated region
        $region17: #{tpu_custom_call.1} parent=11 // pred_check
          %p230 = pneg %p115
        $region18: #{tpu_custom_call.1} parent=11 // pred_check_branch
          %232 = sbr.rel (%p230) target = $region20
        $region19: #{tpu_custom_call.1} parent=11 // pred_region
          %s234 = ssub.s32 2304, 2304
          %235 = vsyncadd [#allocation8], %s234
          %s236 = sshll.u32 [#allocation7], 4
          %s237 = int_to_ptr.vmem [resolvable:$true] %s236
          %242 = dma.hbm_to_vmem [thread:$0]  %s3, 2304, %s237, [#allocation8], 256, 256, 16
        $region20: #{tpu_custom_call.1} parent=11 // pred_fallthru
          _
        // Predicated region
        $region21: #{tpu_custom_call.1} parent=11 // pred_check
          %p243 = pneg %p136
        $region22: #{tpu_custom_call.1} parent=11 // pred_check_branch
          %245 = sbr.rel (%p243) target = $region24
        $region23: #{tpu_custom_call.1} parent=11 // pred_region
          _
        $region24: #{tpu_custom_call.1} parent=11 // pred_fallthru
          _
        // Predicated region
        $region25: #{tpu_custom_call.1} parent=11 // pred_check
          %p246 = pneg %p157
        $region26: #{tpu_custom_call.1} parent=11 // pred_check_branch
          %248 = sbr.rel (%p246) target = $region28
        $region27: #{tpu_custom_call.1} parent=11 // pred_region
          _
        $region28: #{tpu_custom_call.1} parent=11 // pred_fallthru
          _
        // Predicated region
        $region29: #{tpu_custom_call.1} parent=11 // pred_check
          %p249 = pneg %p178
        $region30: #{tpu_custom_call.1} parent=11 // pred_check_branch
          %251 = sbr.rel (%p249) target = $region32
        $region31: #{tpu_custom_call.1} parent=11 // pred_region
          _
        $region32: #{tpu_custom_call.1} parent=11 // pred_fallthru
          _
      $region12: #{tpu_custom_call.1} parent=5 // pred_fallthru
        _
      %p252 = scmp.lt.s32.totalorder %s21, 2
      // Predicated region
      $region33: #{tpu_custom_call.1} parent=5 // pred_check
        %p253 = pneg %p252
      $region34: #{tpu_custom_call.1} parent=5 // pred_check_branch
        %255 = sbr.rel (%p253) target = $region36
      $region35: #{tpu_custom_call.1} parent=5 // pred_region
        // Predicated region
        $region37: #{tpu_custom_call.1} parent=35 // pred_check
          %p256 = pneg %p62
        $region38: #{tpu_custom_call.1} parent=35 // pred_check_branch
          %258 = sbr.rel (%p256) target = $region40
        $region39: #{tpu_custom_call.1} parent=35 // pred_region
          %p259 = scmp.lt.s32.totalorder %s21, 1
          %s260 = scalar_select %p259, %s21, 1
          %s261 = smul.addr %s260, 2
          %s262 = smul.addr %s261, 8
          %s263 = scalar_lea.vmem %s1, %s262
        $region40: #{tpu_custom_call.1} parent=35 // pred_fallthru
          _
        // Predicated region
        $region41: #{tpu_custom_call.1} parent=35 // pred_check
          %p264 = pneg %p88
        $region42: #{tpu_custom_call.1} parent=35 // pred_check_branch
          %266 = sbr.rel (%p264) target = $region44
        $region43: #{tpu_custom_call.1} parent=35 // pred_region
          %s267 = sand.u32 %s78, 1
          %s268 = scalar_lea.sflag [#allocation3], %s267
          %s269 = sand.u32 %s78, 1
          %s270 = smul.addr %s269, 256
          %s271 = scalar_lea.vmem [#allocation6], %s270
          %s273 = ssub.s32 4096, 4096
          %274 = vsyncadd %s268, %s273
          %s275 = smul.addr %s21, 32
          %s276 = smul.addr %s275, 128
          %s277 = scalar_lea.hbm %s2, %s276
          %s278 = sshll.u32 %s271, 4
          %s279 = int_to_ptr.vmem [resolvable:$true] %s278
          %284 = dma.hbm_to_vmem [thread:$0]  %s277, 4096, %s279, %s268, 256, 256, 16
        $region44: #{tpu_custom_call.1} parent=35 // pred_fallthru
          _
      $region36: #{tpu_custom_call.1} parent=5 // pred_fallthru
        _
      %p285 = scmp.le.s32.totalorder 1, %s21
      %p286 = scmp.lt.s32.totalorder %s21, 3
      %p287 = pnand %p285, %p286
      %p288 = pneg %p287
      // Predicated region
      $region45: #{tpu_custom_call.1} parent=5 // pred_check
        _
      $region46: #{tpu_custom_call.1} parent=5 // pred_check_branch
        %290 = sbr.rel (%p287) target = $region48
      $region47: #{tpu_custom_call.1} parent=5 // pred_region
        %s291 = ssub.s32 %s21, 1
        // Predicated region
        $region49: #{tpu_custom_call.1} parent=47 // pred_check
          %p292 = pneg %p42
        $region50: #{tpu_custom_call.1} parent=47 // pred_check_branch
          %294 = sbr.rel (%p292) target = $region52
        $region51: #{tpu_custom_call.1} parent=47 // pred_region
          %295 = dma.done [#allocation5], 64
        $region52: #{tpu_custom_call.1} parent=47 // pred_fallthru
          _
        %s296 = sand.u32 %s81, 1
        %s297 = scalar_lea.sflag [#allocation3], %s296
        %s298 = sand.u32 %s81, 1
        %s299 = smul.addr %s298, 256
        %s300 = scalar_lea.vmem [#allocation6], %s299
        // Predicated region
        $region53: #{tpu_custom_call.1} parent=47 // pred_check
          %p301 = pneg %p94
        $region54: #{tpu_custom_call.1} parent=47 // pred_check_branch
          %303 = sbr.rel (%p301) target = $region56
        $region55: #{tpu_custom_call.1} parent=47 // pred_region
          %304 = dma.done %s297, 4096
        $region56: #{tpu_custom_call.1} parent=47 // pred_fallthru
          _
        // Predicated region
        $region57: #{tpu_custom_call.1} parent=47 // pred_check
          %p305 = pneg %p115
        $region58: #{tpu_custom_call.1} parent=47 // pred_check_branch
          %307 = sbr.rel (%p305) target = $region60
        $region59: #{tpu_custom_call.1} parent=47 // pred_region
          %308 = dma.done [#allocation8], 2304
        $region60: #{tpu_custom_call.1} parent=47 // pred_fallthru
          _
        %309 = sfence
        %p310 = pneg %p42
        %p311 = pneg %p39
        %p312 = scmp.lt.s32.totalorder %s26, 1
        %s313 = scalar_select %p312, %s26, 1
        %s314 = smul.addr %s313, 2
        %s315 = smul.addr %s314, 8
        %s316 = scalar_lea.vmem %s1, %s315
        %p317 = pneg %p68
        %p318 = pneg %p65
        %s319 = sand.u32 %s81, 1
        %s320 = scalar_lea.sflag [#allocation3], %s319
        %s321 = sand.u32 %s81, 1
        %s322 = smul.addr %s321, 256
        %s323 = scalar_lea.vmem [#allocation6], %s322
        %p324 = pneg %p94
        %p325 = pneg %p91
        %p326 = pneg %p115
        %p327 = pneg %p112
        %p328 = pneg %p136
        %p329 = pneg %p133
        %p330 = pneg %p157
        %p331 = pneg %p154
        %p332 = pneg %p178
        %p333 = pneg %p175
        %p334 = pneg %p204
        %p335 = pneg %p201
        %s336 = sand.u32 %s191, 1
        %s337 = scalar_lea.sflag [#allocation4], %s336
        %s338 = sand.u32 %s191, 1
        %s339 = smul.addr %s338, 16
        %s340 = scalar_lea.vmem [#allocation9], %s339
        %p341 = scmp.lt.s32.totalorder %s26, 1
        %s342 = scalar_select %p341, %s26, 1
        %s343 = smul.addr %s342, 2
        %s344 = smul.addr %s343, 8
        %s345 = scalar_lea.vmem %s1, %s344
        %v346 = vld [vmem:[#allocation7] sm:$0xff]
        %v347 = vld [vmem:[#allocation7 + $0x8] sm:$0xff]
        %v348 = vld [vmem:[#allocation7 + $0x10] sm:$0xff]
        %v349 = vld [vmem:[#allocation7 + $0x18] sm:$0xff]
        %v350 = vld [vmem:[#allocation7 + $0x20] sm:$0xff]
        %v351 = vld [vmem:[#allocation7 + $0x28] sm:$0xff]
        %v352 = vld [vmem:[#allocation7 + $0x30] sm:$0xff]
        %v353 = vld [vmem:[#allocation7 + $0x38] sm:$0xff]
        %v354 = vld [vmem:[#allocation7 + $0x40] sm:$0xff]
        %v355 = vld [vmem:[#allocation7 + $0x48] sm:$0xff]
        %v356 = vld [vmem:[#allocation7 + $0x50] sm:$0xff]
        %v357 = vld [vmem:[#allocation7 + $0x58] sm:$0xff]
        %v358 = vld [vmem:[#allocation7 + $0x60] sm:$0xff]
        %v359 = vld [vmem:[#allocation7 + $0x68] sm:$0xff]
        %v360 = vld [vmem:[#allocation7 + $0x70] sm:$0xff]
        %v361 = vld [vmem:[#allocation7 + $0x78] sm:$0xff]
        %v362 = vld [vmem:[#allocation7 + $0x80] sm:$0xff]
        %v363 = vld [vmem:[#allocation7 + $0x88] sm:$0xff]
        %v364 = vld [vmem:[%s4] sm:$0xff]
        %v365 = vld [vmem:[%s4 + $0x8] sm:$0xff]
        %v366 = vld [vmem:[%s4 + $0x10] sm:$0xff]
        %v367 = vld [vmem:[%s4 + $0x18] sm:$0xff]
        %v368 = vld [vmem:[%s5] sm:$0xff]
        %v369 = vld [vmem:[%s5 + $0x8] sm:$0xff]
        %v370 = vld [vmem:[%s5 + $0x10] sm:$0xff]
        %v371 = vld [vmem:[%s5 + $0x18] sm:$0xff]
        %v372 = vld [vmem:[%s5 + $0x20] sm:$0xff]
        %v373 = vld [vmem:[%s5 + $0x28] sm:$0xff]
        %v374 = vld [vmem:[%s5 + $0x30] sm:$0xff]
        %v375 = vld [vmem:[%s5 + $0x38] sm:$0xff]
        %v376 = vld [vmem:[%s5 + $0x40] sm:$0xff]
        %v377 = vld [vmem:[%s6] sm:$0xff]
        %v378 = vld [vmem:[%s6 + $0x8] sm:$0xff]
        %v379 = vld [vmem:[%s345] sm:$0xff]
        %v380 = vld [vmem:[%s345 + $0x8] sm:$0xff]
        %s381 = sld [smem:[#allocation2]]
        %s382 = sld [smem:[#allocation2 + $0x1]]
        %v383 = vstv %s381
        %v384 = vmul.f32 %v379, %v383
        %v385 = vmul.f32 %v380, %v383
        %386 = vrot.lane.b32.xlu0 %v384, 17
        %v387 = vpop.permute.xlu0 %386
        %388 = vrot.lane.b32.xlu0 %v385, 17
        %v389 = vpop.permute.xlu0 %388
        %v390 = vlaneseq
        %v391 = vand.u32 %v390, 127
        %vm392 = vcmp.lt.s32.totalorder %v391, 17
        %v393 = vsel %vm392, %v387, %v389
        %v394 = vsel %vm392, %v389, %v387
        %395 = vrot.lane.b32.xlu0 %v384, 16
        %v396 = vpop.permute.xlu0 %395
        %397 = vrot.lane.b32.xlu0 %v385, 16
        %v398 = vpop.permute.xlu0 %397
        %vm399 = vcmp.lt.s32.totalorder %v391, 16
        %v400 = vsel %vm399, %v396, %v398
        %v401 = vsel %vm399, %v398, %v396
        %402 = vrot.lane.b32.xlu0 %v384, 15
        %v403 = vpop.permute.xlu0 %402
        %404 = vrot.lane.b32.xlu0 %v385, 15
        %v405 = vpop.permute.xlu0 %404
        %vm406 = vcmp.lt.s32.totalorder %v391, 15
        %v407 = vsel %vm406, %v403, %v405
        %v408 = vsel %vm406, %v405, %v403
        %409 = vrot.lane.b32.xlu0 %v384, 1
        %v410 = vpop.permute.xlu0 %409
        %411 = vrot.lane.b32.xlu0 %v385, 1
        %v412 = vpop.permute.xlu0 %411
        %vm413 = vcmp.lt.s32.totalorder %v391, 1
        %v414 = vsel %vm413, %v410, %v412
        %v415 = vsel %vm413, %v412, %v410
        %416 = vrot.lane.b32.xlu0 %v384, 127
        %v417 = vpop.permute.xlu0 %416
        %418 = vrot.lane.b32.xlu0 %v385, 127
        %v419 = vpop.permute.xlu0 %418
        %vm420 = vcmp.lt.s32.totalorder %v391, 127
        %v421 = vsel %vm420, %v417, %v419
        %v422 = vsel %vm420, %v419, %v417
        %423 = vrot.lane.b32.xlu0 %v384, 113
        %v424 = vpop.permute.xlu0 %423
        %425 = vrot.lane.b32.xlu0 %v385, 113
        %v426 = vpop.permute.xlu0 %425
        %vm427 = vcmp.lt.s32.totalorder %v391, 113
        %v428 = vsel %vm427, %v424, %v426
        %v429 = vsel %vm427, %v426, %v424
        %430 = vrot.lane.b32.xlu0 %v384, 112
        %v431 = vpop.permute.xlu0 %430
        %432 = vrot.lane.b32.xlu0 %v385, 112
        %v433 = vpop.permute.xlu0 %432
        %vm434 = vcmp.lt.s32.totalorder %v391, 112
        %v435 = vsel %vm434, %v431, %v433
        %v436 = vsel %vm434, %v433, %v431
        %437 = vrot.lane.b32.xlu0 %v384, 111
        %v438 = vpop.permute.xlu0 %437
        %439 = vrot.lane.b32.xlu0 %v385, 111
        %v440 = vpop.permute.xlu0 %439
        %vm441 = vcmp.lt.s32.totalorder %v391, 111
        %v442 = vsel %vm441, %v438, %v440
        %v443 = vsel %vm441, %v440, %v438
        %v444 = vmul.f32 %v394, %v346
        %v445 = vmul.f32 %v393, %v347
        %v446 = vmul.f32 %v401, %v348
        %v447 = vmul.f32 %v400, %v349
        %v448 = vmul.f32 %v408, %v350
        %v449 = vmul.f32 %v407, %v351
        %v450 = vmul.f32 %v415, %v352
        %v451 = vmul.f32 %v414, %v353
        %v452 = vmul.f32 %v384, %v354
        %v453 = vmul.f32 %v385, %v355
        %v454 = vmul.f32 %v421, %v356
        %v455 = vmul.f32 %v422, %v357
        %v456 = vmul.f32 %v428, %v358
        %v457 = vmul.f32 %v429, %v359
        %v458 = vmul.f32 %v435, %v360
        %v459 = vmul.f32 %v436, %v361
        %v460 = vmul.f32 %v442, %v362
        %v461 = vmul.f32 %v443, %v363
        %v462 = vld [vmem:[%s300] sm:$0xff]
        %v463 = vld [vmem:[%s300 + $0x8] sm:$0xff]
        %v464 = vld [vmem:[%s300 + $0x10] sm:$0xff]
        %v465 = vld [vmem:[%s300 + $0x18] sm:$0xff]
        %v466 = vld [vmem:[%s300 + $0x20] sm:$0xff]
        %v467 = vld [vmem:[%s300 + $0x28] sm:$0xff]
        %v468 = vld [vmem:[%s300 + $0x30] sm:$0xff]
        %v469 = vld [vmem:[%s300 + $0x38] sm:$0xff]
        %vm470 = vcmask 588800
        %v472 = vsel %vm470, %v364, 0
        %v475 = vsel %vm470, %v365, 0
        %v478 = vsel %vm470, %v366, 0
        %v481 = vsel %vm470, %v367, 0
        %483 = vmatprep.subr.mxu0 0.0
        %484 = vmatpush1.msra.mxu0 0.0
        %485 = vmatprep.subr.mxu0 0.0
        %486 = vmatpush1.msra.mxu0 0.0
        %487 = vmatprep.subr.mxu0 0.0
        %488 = vmatpush1.msra.mxu0 0.0
        %489 = vmatprep.subr.mxu0 0.0
        %490 = vmatpush1.msra.mxu0 0.0
        %491 = vmatprep.subr.mxu0 0.0
        %492 = vmatpush1.msra.mxu0 0.0
        %493 = vmatprep.subr.mxu0 0.0
        %494 = vmatpush1.msra.mxu0 0.0
        %495 = vmatprep.subr.mxu0 0.0
        %496 = vmatpush1.msra.mxu0 0.0
        %497 = vmatprep.subr.mxu0 %v461
        %498 = vmatpush1.msra.mxu0 %v460
        %499 = vmatprep.subr.mxu0 %v459
        %500 = vmatpush1.msra.mxu0 %v458
        %501 = vmatprep.subr.mxu0 %v457
        %502 = vmatpush1.msra.mxu0 %v456
        %503 = vmatprep.subr.mxu0 %v455
        %504 = vmatpush1.msra.mxu0 %v454
        %505 = vmatprep.subr.mxu0 %v453
        %506 = vmatpush1.msra.mxu0 %v452
        %507 = vmatprep.subr.mxu0 %v451
        %508 = vmatpush1.msra.mxu0 %v450
        %509 = vmatprep.subr.mxu0 %v449
        %510 = vmatpush1.msra.mxu0 %v448
        %511 = vmatprep.subr.mxu0 %v447
        %512 = vmatpush1.msra.mxu0 %v446
        %513 = vmatprep.subr.mxu0 %v445
        %514 = vmatpush1.msra.mxu0 %v444
        %515 = vmatprep.subr.mxu0 0.0
        %516 = vmatpush2.msra.mxu0 0.0
        %517 = vmatprep.subr.mxu0 0.0
        %518 = vmatpush2.msra.mxu0 0.0
        %519 = vmatprep.subr.mxu0 0.0
        %520 = vmatpush2.msra.mxu0 0.0
        %521 = vmatprep.subr.mxu0 0.0
        %522 = vmatpush2.msra.mxu0 0.0
        %523 = vmatprep.subr.mxu0 0.0
        %524 = vmatpush2.msra.mxu0 0.0
        %525 = vmatprep.subr.mxu0 0.0
        %526 = vmatpush2.msra.mxu0 0.0
        %527 = vmatprep.subr.mxu0 0.0
        %528 = vmatpush2.msra.mxu0 0.0
        %529 = vmatprep.subr.mxu0 0.0
        %530 = vmatpush2.msra.mxu0 0.0
        %531 = vmatprep.subr.mxu0 0.0
        %532 = vmatpush2.msra.mxu0 0.0
        %533 = vmatprep.subr.mxu0 0.0
        %534 = vmatpush2.msra.mxu0 0.0
        %535 = vmatprep.subr.mxu0 0.0
        %536 = vmatpush2.msra.mxu0 0.0
        %537 = vmatprep.subr.mxu0 0.0
        %538 = vmatpush2.msra.mxu0 0.0
        %539 = vmatprep.subr.mxu0 0.0
        %540 = vmatpush2.msra.mxu0 0.0
        %541 = vmatprep.subr.mxu0 0.0
        %542 = vmatpush2.msra.mxu0 0.0
        %543 = vmatprep.subr.mxu0 0.0
        %544 = vmatpush2.msra.mxu0 0.0
        %545 = vmatprep.subr.mxu0 0.0
        %546 = vmatpush2.msra.mxu0 0.0
        %547 = vmatprep.mubr.f32.mxu0 0.0
        %548 = vmatmul.mubr.f32.gmra.mxu0 %v472
        %v549 = vpop.f32.mrf.mxu0
        %v550 = vadd.f32 %v462, %v549
        %v551 = vpop.f32.mrf.mxu0
        %v552 = vadd.f32 %v463, %v551
        %553 = vmatprep.mubr.f32.mxu0 0.0
        %554 = vmatmul.mubr.f32.gmra.mxu0 %v475
        %v555 = vpop.f32.mrf.mxu0
        %v556 = vadd.f32 %v464, %v555
        %v557 = vpop.f32.mrf.mxu0
        %v558 = vadd.f32 %v465, %v557
        %559 = vmatprep.mubr.f32.mxu0 0.0
        %560 = vmatmul.mubr.f32.gmra.mxu0 %v478
        %v561 = vpop.f32.mrf.mxu0
        %v562 = vadd.f32 %v466, %v561
        %v563 = vpop.f32.mrf.mxu0
        %v564 = vadd.f32 %v467, %v563
        %565 = vmatprep.mubr.f32.mxu0 0.0
        %566 = vmatmul.mubr.f32.gmra.mxu0 %v481
        %v567 = vpop.f32.mrf.mxu0
        %v568 = vadd.f32 %v468, %v567
        %v569 = vpop.f32.mrf.mxu0
        %v570 = vadd.f32 %v469, %v569
        %571 = vdwg.mxu0
        %v572 = vxor.u32 %v550, 2147483648
        %v573 = vxor.u32 %v552, 2147483648
        %v574 = vxor.u32 %v556, 2147483648
        %v575 = vxor.u32 %v558, 2147483648
        %v576 = vxor.u32 %v562, 2147483648
        %v577 = vxor.u32 %v564, 2147483648
        %v578 = vxor.u32 %v568, 2147483648
        %v579 = vxor.u32 %v570, 2147483648
        %v580 = vmul.f32 %v572, 1.442695
        %v581 = vpow.pop %v580
        %v582 = vmul.f32 %v573, 1.442695
        %v583 = vpow.pop %v582
        %v584 = vmul.f32 %v574, 1.442695
        %v585 = vpow.pop %v584
        %v586 = vmul.f32 %v575, 1.442695
        %v587 = vpow.pop %v586
        %v588 = vmul.f32 %v576, 1.442695
        %v589 = vpow.pop %v588
        %v590 = vmul.f32 %v577, 1.442695
        %v591 = vpow.pop %v590
        %v592 = vmul.f32 %v578, 1.442695
        %v593 = vpow.pop %v592
        %v594 = vmul.f32 %v579, 1.442695
        %v595 = vpow.pop %v594
        %v596 = vadd.f32 %v581, 1.0
        %v597 = vadd.f32 %v583, 1.0
        %v598 = vadd.f32 %v585, 1.0
        %v599 = vadd.f32 %v587, 1.0
        %v600 = vadd.f32 %v589, 1.0
        %v601 = vadd.f32 %v591, 1.0
        %v602 = vadd.f32 %v593, 1.0
        %v603 = vadd.f32 %v595, 1.0
        %v604 = vrcp.pop %v596
        %v605 = vmul.f32 1.0, %v604
        %v606 = vrcp.pop %v597
        %v607 = vmul.f32 1.0, %v606
        %v608 = vrcp.pop %v598
        %v609 = vmul.f32 1.0, %v608
        %v610 = vrcp.pop %v599
        %v611 = vmul.f32 1.0, %v610
        %v612 = vrcp.pop %v600
        %v613 = vmul.f32 1.0, %v612
        %v614 = vrcp.pop %v601
        %v615 = vmul.f32 1.0, %v614
        %v616 = vrcp.pop %v602
        %v617 = vmul.f32 1.0, %v616
        %v618 = vrcp.pop %v603
        %v619 = vmul.f32 1.0, %v618
        %v620 = vmul.f32 %v550, %v605
        %v621 = vmul.f32 %v552, %v607
        %v622 = vmul.f32 %v556, %v609
        %v623 = vmul.f32 %v558, %v611
        %v624 = vmul.f32 %v562, %v613
        %v625 = vmul.f32 %v564, %v615
        %v626 = vmul.f32 %v568, %v617
        %v627 = vmul.f32 %v570, %v619
        %vm628 = vcmask 261120
        %v630 = vsel %vm628, %v368, 0
        %v633 = vsel %vm628, %v369, 0
        %v636 = vsel %vm628, %v370, 0
        %v639 = vsel %vm628, %v371, 0
        %v642 = vsel %vm628, %v372, 0
        %v645 = vsel %vm628, %v373, 0
        %v648 = vsel %vm628, %v374, 0
        %v651 = vsel %vm628, %v375, 0
        %v654 = vsel %vm628, %v376, 0
        %656 = vmatprep.subr.mxu0 0.0
        %657 = vmatpush1.msra.mxu0 0.0
        %658 = vmatprep.subr.mxu0 0.0
        %659 = vmatpush1.msra.mxu0 0.0
        %660 = vmatprep.subr.mxu0 0.0
        %661 = vmatpush1.msra.mxu0 0.0
        %662 = vmatprep.subr.mxu0 0.0
        %663 = vmatpush1.msra.mxu0 0.0
        %664 = vmatprep.subr.mxu0 0.0
        %665 = vmatpush1.msra.mxu0 0.0
        %666 = vmatprep.subr.mxu0 0.0
        %667 = vmatpush1.msra.mxu0 0.0
        %668 = vmatprep.subr.mxu0 0.0
        %669 = vmatpush1.msra.mxu0 0.0
        %670 = vmatprep.subr.mxu0 0.0
        %671 = vmatpush1.msra.mxu0 0.0
        %672 = vmatprep.subr.mxu0 0.0
        %673 = vmatpush1.msra.mxu0 0.0
        %674 = vmatprep.subr.mxu0 0.0
        %675 = vmatpush1.msra.mxu0 0.0
        %676 = vmatprep.subr.mxu0 0.0
        %677 = vmatpush1.msra.mxu0 0.0
        %678 = vmatprep.subr.mxu0 0.0
        %679 = vmatpush1.msra.mxu0 0.0
        %680 = vmatprep.subr.mxu0 %v627
        %681 = vmatpush1.msra.mxu0 %v626
        %682 = vmatprep.subr.mxu0 %v625
        %683 = vmatpush1.msra.mxu0 %v624
        %684 = vmatprep.subr.mxu0 %v623
        %685 = vmatpush1.msra.mxu0 %v622
        %686 = vmatprep.subr.mxu0 %v621
        %687 = vmatpush1.msra.mxu0 %v620
        %688 = vmatprep.subr.mxu0 0.0
        %689 = vmatpush2.msra.mxu0 0.0
        %690 = vmatprep.subr.mxu0 0.0
        %691 = vmatpush2.msra.mxu0 0.0
        %692 = vmatprep.subr.mxu0 0.0
        %693 = vmatpush2.msra.mxu0 0.0
        %694 = vmatprep.subr.mxu0 0.0
        %695 = vmatpush2.msra.mxu0 0.0
        %696 = vmatprep.subr.mxu0 0.0
        %697 = vmatpush2.msra.mxu0 0.0
        %698 = vmatprep.subr.mxu0 0.0
        %699 = vmatpush2.msra.mxu0 0.0
        %700 = vmatprep.subr.mxu0 0.0
        %701 = vmatpush2.msra.mxu0 0.0
        %702 = vmatprep.subr.mxu0 0.0
        %703 = vmatpush2.msra.mxu0 0.0
        %704 = vmatprep.subr.mxu0 0.0
        %705 = vmatpush2.msra.mxu0 0.0
        %706 = vmatprep.subr.mxu0 0.0
        %707 = vmatpush2.msra.mxu0 0.0
        %708 = vmatprep.subr.mxu0 0.0
        %709 = vmatpush2.msra.mxu0 0.0
        %710 = vmatprep.subr.mxu0 0.0
        %711 = vmatpush2.msra.mxu0 0.0
        %712 = vmatprep.subr.mxu0 0.0
        %713 = vmatpush2.msra.mxu0 0.0
        %714 = vmatprep.subr.mxu0 0.0
        %715 = vmatpush2.msra.mxu0 0.0
        %716 = vmatprep.subr.mxu0 0.0
        %717 = vmatpush2.msra.mxu0 0.0
        %718 = vmatprep.subr.mxu0 0.0
        %719 = vmatpush2.msra.mxu0 0.0
        %720 = vmatprep.mubr.f32.mxu0 0.0
        %721 = vmatmul.mubr.f32.gmra.mxu0 %v630
        %v722 = vpop.f32.mrf.mxu0
        %v723 = vadd.f32 0.0, %v722
        %v724 = vpop.f32.mrf.mxu0
        %v725 = vadd.f32 0.0, %v724
        %726 = vmatprep.mubr.f32.mxu0 0.0
        %727 = vmatmul.mubr.f32.gmra.mxu0 %v633
        %v728 = vpop.f32.mrf.mxu0
        %v729 = vadd.f32 0.0, %v728
        %v730 = vpop.f32.mrf.mxu0
        %v731 = vadd.f32 0.0, %v730
        %732 = vmatprep.mubr.f32.mxu0 0.0
        %733 = vmatmul.mubr.f32.gmra.mxu0 %v636
        %v734 = vpop.f32.mrf.mxu0
        %v735 = vadd.f32 0.0, %v734
        %v736 = vpop.f32.mrf.mxu0
        %v737 = vadd.f32 0.0, %v736
        %738 = vmatprep.mubr.f32.mxu0 0.0
        %739 = vmatmul.mubr.f32.gmra.mxu0 %v639
        %v740 = vpop.f32.mrf.mxu0
        %v741 = vadd.f32 0.0, %v740
        %v742 = vpop.f32.mrf.mxu0
        %v743 = vadd.f32 0.0, %v742
        %744 = vmatprep.mubr.f32.mxu0 0.0
        %745 = vmatmul.mubr.f32.gmra.mxu0 %v642
        %v746 = vpop.f32.mrf.mxu0
        %v747 = vadd.f32 0.0, %v746
        %v748 = vpop.f32.mrf.mxu0
        %v749 = vadd.f32 0.0, %v748
        %750 = vmatprep.mubr.f32.mxu0 0.0
        %751 = vmatmul.mubr.f32.gmra.mxu0 %v645
        %v752 = vpop.f32.mrf.mxu0
        %v753 = vadd.f32 0.0, %v752
        %v754 = vpop.f32.mrf.mxu0
        %v755 = vadd.f32 0.0, %v754
        %756 = vmatprep.mubr.f32.mxu0 0.0
        %757 = vmatmul.mubr.f32.gmra.mxu0 %v648
        %v758 = vpop.f32.mrf.mxu0
        %v759 = vadd.f32 0.0, %v758
        %v760 = vpop.f32.mrf.mxu0
        %v761 = vadd.f32 0.0, %v760
        %762 = vmatprep.mubr.f32.mxu0 0.0
        %763 = vmatmul.mubr.f32.gmra.mxu0 %v651
        %v764 = vpop.f32.mrf.mxu0
        %v765 = vadd.f32 0.0, %v764
        %v766 = vpop.f32.mrf.mxu0
        %v767 = vadd.f32 0.0, %v766
        %768 = vmatprep.mubr.f32.mxu0 0.0
        %769 = vmatmul.mubr.f32.gmra.mxu0 %v654
        %v770 = vpop.f32.mrf.mxu0
        %v771 = vadd.f32 0.0, %v770
        %v772 = vpop.f32.mrf.mxu0
        %v773 = vadd.f32 0.0, %v772
        %774 = vdwg.mxu0
        %775 = vrot.lane.b32.xlu0 %v723, 17
        %v776 = vpop.permute.xlu0 %775
        %777 = vrot.lane.b32.xlu0 %v725, 17
        %v778 = vpop.permute.xlu0 %777
        %v779 = vsel %vm392, %v776, %v778
        %v780 = vsel %vm392, %v778, %v776
        %v781 = vmul.f32 %v780, %v346
        %v782 = vmul.f32 %v779, %v347
        %v783 = vadd.f32 %v747, %v781
        %v784 = vadd.f32 %v749, %v782
        %785 = vrot.lane.b32.xlu0 %v729, 16
        %v786 = vpop.permute.xlu0 %785
        %787 = vrot.lane.b32.xlu0 %v731, 16
        %v788 = vpop.permute.xlu0 %787
        %v789 = vsel %vm399, %v786, %v788
        %v790 = vsel %vm399, %v788, %v786
        %v791 = vmul.f32 %v790, %v348
        %v792 = vmul.f32 %v789, %v349
        %v793 = vadd.f32 %v783, %v791
        %v794 = vadd.f32 %v784, %v792
        %795 = vrot.lane.b32.xlu0 %v735, 15
        %v796 = vpop.permute.xlu0 %795
        %797 = vrot.lane.b32.xlu0 %v737, 15
        %v798 = vpop.permute.xlu0 %797
        %v799 = vsel %vm406, %v796, %v798
        %v800 = vsel %vm406, %v798, %v796
        %v801 = vmul.f32 %v800, %v350
        %v802 = vmul.f32 %v799, %v351
        %v803 = vadd.f32 %v793, %v801
        %v804 = vadd.f32 %v794, %v802
        %805 = vrot.lane.b32.xlu0 %v741, 1
        %v806 = vpop.permute.xlu0 %805
        %807 = vrot.lane.b32.xlu0 %v743, 1
        %v808 = vpop.permute.xlu0 %807
        %v809 = vsel %vm413, %v806, %v808
        %v810 = vsel %vm413, %v808, %v806
        %v811 = vmul.f32 %v810, %v352
        %v812 = vmul.f32 %v809, %v353
        %v813 = vadd.f32 %v803, %v811
        %v814 = vadd.f32 %v804, %v812
        %815 = vrot.lane.b32.xlu0 %v753, 127
        %v816 = vpop.permute.xlu0 %815
        %817 = vrot.lane.b32.xlu0 %v755, 127
        %v818 = vpop.permute.xlu0 %817
        %v819 = vsel %vm420, %v816, %v818
        %v820 = vsel %vm420, %v818, %v816
        %v821 = vmul.f32 %v819, %v356
        %v822 = vmul.f32 %v820, %v357
        %v823 = vadd.f32 %v813, %v821
        %v824 = vadd.f32 %v814, %v822
        %825 = vrot.lane.b32.xlu0 %v759, 113
        %v826 = vpop.permute.xlu0 %825
        %827 = vrot.lane.b32.xlu0 %v761, 113
        %v828 = vpop.permute.xlu0 %827
        %v829 = vsel %vm427, %v826, %v828
        %v830 = vsel %vm427, %v828, %v826
        %v831 = vmul.f32 %v829, %v358
        %v832 = vmul.f32 %v830, %v359
        %v833 = vadd.f32 %v823, %v831
        %v834 = vadd.f32 %v824, %v832
        %835 = vrot.lane.b32.xlu0 %v765, 112
        %v836 = vpop.permute.xlu0 %835
        %837 = vrot.lane.b32.xlu0 %v767, 112
        %v838 = vpop.permute.xlu0 %837
        %v839 = vsel %vm434, %v836, %v838
        %v840 = vsel %vm434, %v838, %v836
        %v841 = vmul.f32 %v839, %v360
        %v842 = vmul.f32 %v840, %v361
        %v843 = vadd.f32 %v833, %v841
        %v844 = vadd.f32 %v834, %v842
        %845 = vrot.lane.b32.xlu0 %v771, 111
        %v846 = vpop.permute.xlu0 %845
        %847 = vrot.lane.b32.xlu0 %v773, 111
        %v848 = vpop.permute.xlu0 %847
        %v849 = vsel %vm441, %v846, %v848
        %v850 = vsel %vm441, %v848, %v846
        %v851 = vmul.f32 %v849, %v362
        %v852 = vmul.f32 %v850, %v363
        %v853 = vadd.f32 %v843, %v851
        %v854 = vadd.f32 %v844, %v852
        %v855 = vadd.f32 %v853, %v377
        %v856 = vadd.f32 %v854, %v378
        %v857 = vstv %s382
        %v858 = vmul.f32 %v855, %v857
        %v859 = vmul.f32 %v856, %v857
        %v860 = vadd.f32 %v379, %v858
        %v861 = vadd.f32 %v380, %v859
        %s862 = sld [smem:[#allocation2 + $0x80]]
        %s863 = sld [smem:[#allocation2 + $0x81]]
        %v864 = vstv %s862
        %v865 = vmul.f32 %v860, %v864
        %v866 = vmul.f32 %v861, %v864
        %867 = vrot.lane.b32.xlu0 %v865, 17
        %v868 = vpop.permute.xlu0 %867
        %869 = vrot.lane.b32.xlu0 %v866, 17
        %v870 = vpop.permute.xlu0 %869
        %v871 = vsel %vm392, %v868, %v870
        %v872 = vsel %vm392, %v870, %v868
        %873 = vrot.lane.b32.xlu0 %v865, 16
        %v874 = vpop.permute.xlu0 %873
        %875 = vrot.lane.b32.xlu0 %v866, 16
        %v876 = vpop.permute.xlu0 %875
        %v877 = vsel %vm399, %v874, %v876
        %v878 = vsel %vm399, %v876, %v874
        %879 = vrot.lane.b32.xlu0 %v865, 15
        %v880 = vpop.permute.xlu0 %879
        %881 = vrot.lane.b32.xlu0 %v866, 15
        %v882 = vpop.permute.xlu0 %881
        %v883 = vsel %vm406, %v880, %v882
        %v884 = vsel %vm406, %v882, %v880
        %885 = vrot.lane.b32.xlu0 %v865, 1
        %v886 = vpop.permute.xlu0 %885
        %887 = vrot.lane.b32.xlu0 %v866, 1
        %v888 = vpop.permute.xlu0 %887
        %v889 = vsel %vm413, %v886, %v888
        %v890 = vsel %vm413, %v888, %v886
        %891 = vrot.lane.b32.xlu0 %v865, 127
        %v892 = vpop.permute.xlu0 %891
        %893 = vrot.lane.b32.xlu0 %v866, 127
        %v894 = vpop.permute.xlu0 %893
        %v895 = vsel %vm420, %v892, %v894
        %v896 = vsel %vm420, %v894, %v892
        %897 = vrot.lane.b32.xlu0 %v865, 113
        %v898 = vpop.permute.xlu0 %897
        %899 = vrot.lane.b32.xlu0 %v866, 113
        %v900 = vpop.permute.xlu0 %899
        %v901 = vsel %vm427, %v898, %v900
        %v902 = vsel %vm427, %v900, %v898
        %903 = vrot.lane.b32.xlu0 %v865, 112
        %v904 = vpop.permute.xlu0 %903
        %905 = vrot.lane.b32.xlu0 %v866, 112
        %v906 = vpop.permute.xlu0 %905
        %v907 = vsel %vm434, %v904, %v906
        %v908 = vsel %vm434, %v906, %v904
        %909 = vrot.lane.b32.xlu0 %v865, 111
        %v910 = vpop.permute.xlu0 %909
        %911 = vrot.lane.b32.xlu0 %v866, 111
        %v912 = vpop.permute.xlu0 %911
        %v913 = vsel %vm441, %v910, %v912
        %v914 = vsel %vm441, %v912, %v910
        %v915 = vmul.f32 %v872, %v346
        %v916 = vmul.f32 %v871, %v347
        %v917 = vmul.f32 %v878, %v348
        %v918 = vmul.f32 %v877, %v349
        %v919 = vmul.f32 %v884, %v350
        %v920 = vmul.f32 %v883, %v351
        %v921 = vmul.f32 %v890, %v352
        %v922 = vmul.f32 %v889, %v353
        %v923 = vmul.f32 %v865, %v354
        %v924 = vmul.f32 %v866, %v355
        %v925 = vmul.f32 %v895, %v356
        %v926 = vmul.f32 %v896, %v357
        %v927 = vmul.f32 %v901, %v358
        %v928 = vmul.f32 %v902, %v359
        %v929 = vmul.f32 %v907, %v360
        %v930 = vmul.f32 %v908, %v361
        %v931 = vmul.f32 %v913, %v362
        %v932 = vmul.f32 %v914, %v363
        %s933 = scalar_lea.vmem %s300, 64 [#allocation6]
        %v934 = vld [vmem:[%s933] sm:$0xff]
        %v935 = vld [vmem:[%s933 + $0x8] sm:$0xff]
        %v936 = vld [vmem:[%s933 + $0x10] sm:$0xff]
        %v937 = vld [vmem:[%s933 + $0x18] sm:$0xff]
        %v938 = vld [vmem:[%s933 + $0x20] sm:$0xff]
        %v939 = vld [vmem:[%s933 + $0x28] sm:$0xff]
        %v940 = vld [vmem:[%s933 + $0x30] sm:$0xff]
        %v941 = vld [vmem:[%s933 + $0x38] sm:$0xff]
        %942 = vmatprep.subr.mxu0 0.0
        %943 = vmatpush1.msra.mxu0 0.0
        %944 = vmatprep.subr.mxu0 0.0
        %945 = vmatpush1.msra.mxu0 0.0
        %946 = vmatprep.subr.mxu0 0.0
        %947 = vmatpush1.msra.mxu0 0.0
        %948 = vmatprep.subr.mxu0 0.0
        %949 = vmatpush1.msra.mxu0 0.0
        %950 = vmatprep.subr.mxu0 0.0
        %951 = vmatpush1.msra.mxu0 0.0
        %952 = vmatprep.subr.mxu0 0.0
        %953 = vmatpush1.msra.mxu0 0.0
        %954 = vmatprep.subr.mxu0 0.0
        %955 = vmatpush1.msra.mxu0 0.0
        %956 = vmatprep.subr.mxu0 %v932
        %957 = vmatpush1.msra.mxu0 %v931
        %958 = vmatprep.subr.mxu0 %v930
        %959 = vmatpush1.msra.mxu0 %v929
        %960 = vmatprep.subr.mxu0 %v928
        %961 = vmatpush1.msra.mxu0 %v927
        %962 = vmatprep.subr.mxu0 %v926
        %963 = vmatpush1.msra.mxu0 %v925
        %964 = vmatprep.subr.mxu0 %v924
        %965 = vmatpush1.msra.mxu0 %v923
        %966 = vmatprep.subr.mxu0 %v922
        %967 = vmatpush1.msra.mxu0 %v921
        %968 = vmatprep.subr.mxu0 %v920
        %969 = vmatpush1.msra.mxu0 %v919
        %970 = vmatprep.subr.mxu0 %v918
        %971 = vmatpush1.msra.mxu0 %v917
        %972 = vmatprep.subr.mxu0 %v916
        %973 = vmatpush1.msra.mxu0 %v915
        %974 = vmatprep.subr.mxu0 0.0
        %975 = vmatpush2.msra.mxu0 0.0
        %976 = vmatprep.subr.mxu0 0.0
        %977 = vmatpush2.msra.mxu0 0.0
        %978 = vmatprep.subr.mxu0 0.0
        %979 = vmatpush2.msra.mxu0 0.0
        %980 = vmatprep.subr.mxu0 0.0
        %981 = vmatpush2.msra.mxu0 0.0
        %982 = vmatprep.subr.mxu0 0.0
        %983 = vmatpush2.msra.mxu0 0.0
        %984 = vmatprep.subr.mxu0 0.0
        %985 = vmatpush2.msra.mxu0 0.0
        %986 = vmatprep.subr.mxu0 0.0
        %987 = vmatpush2.msra.mxu0 0.0
        %988 = vmatprep.subr.mxu0 0.0
        %989 = vmatpush2.msra.mxu0 0.0
        %990 = vmatprep.subr.mxu0 0.0
        %991 = vmatpush2.msra.mxu0 0.0
        %992 = vmatprep.subr.mxu0 0.0
        %993 = vmatpush2.msra.mxu0 0.0
        %994 = vmatprep.subr.mxu0 0.0
        %995 = vmatpush2.msra.mxu0 0.0
        %996 = vmatprep.subr.mxu0 0.0
        %997 = vmatpush2.msra.mxu0 0.0
        %998 = vmatprep.subr.mxu0 0.0
        %999 = vmatpush2.msra.mxu0 0.0
        %1000 = vmatprep.subr.mxu0 0.0
        %1001 = vmatpush2.msra.mxu0 0.0
        %1002 = vmatprep.subr.mxu0 0.0
        %1003 = vmatpush2.msra.mxu0 0.0
        %1004 = vmatprep.subr.mxu0 0.0
        %1005 = vmatpush2.msra.mxu0 0.0
        %1006 = vmatprep.mubr.f32.mxu0 0.0
        %1007 = vmatmul.mubr.f32.gmra.mxu0 %v472
        %v1008 = vpop.f32.mrf.mxu0
        %v1009 = vadd.f32 %v934, %v1008
        %v1010 = vpop.f32.mrf.mxu0
        %v1011 = vadd.f32 %v935, %v1010
        %1012 = vmatprep.mubr.f32.mxu0 0.0
        %1013 = vmatmul.mubr.f32.gmra.mxu0 %v475
        %v1014 = vpop.f32.mrf.mxu0
        %v1015 = vadd.f32 %v936, %v1014
        %v1016 = vpop.f32.mrf.mxu0
        %v1017 = vadd.f32 %v937, %v1016
        %1018 = vmatprep.mubr.f32.mxu0 0.0
        %1019 = vmatmul.mubr.f32.gmra.mxu0 %v478
        %v1020 = vpop.f32.mrf.mxu0
        %v1021 = vadd.f32 %v938, %v1020
        %v1022 = vpop.f32.mrf.mxu0
        %v1023 = vadd.f32 %v939, %v1022
        %1024 = vmatprep.mubr.f32.mxu0 0.0
        %1025 = vmatmul.mubr.f32.gmra.mxu0 %v481
        %v1026 = vpop.f32.mrf.mxu0
        %v1027 = vadd.f32 %v940, %v1026
        %v1028 = vpop.f32.mrf.mxu0
        %v1029 = vadd.f32 %v941, %v1028
        %1030 = vdwg.mxu0
        %v1031 = vxor.u32 %v1009, 2147483648
        %v1032 = vxor.u32 %v1011, 2147483648
        %v1033 = vxor.u32 %v1015, 2147483648
        %v1034 = vxor.u32 %v1017, 2147483648
        %v1035 = vxor.u32 %v1021, 2147483648
        %v1036 = vxor.u32 %v1023, 2147483648
        %v1037 = vxor.u32 %v1027, 2147483648
        %v1038 = vxor.u32 %v1029, 2147483648
        %v1039 = vmul.f32 %v1031, 1.442695
        %v1040 = vpow.pop %v1039
        %v1041 = vmul.f32 %v1032, 1.442695
        %v1042 = vpow.pop %v1041
        %v1043 = vmul.f32 %v1033, 1.442695
        %v1044 = vpow.pop %v1043
        %v1045 = vmul.f32 %v1034, 1.442695
        %v1046 = vpow.pop %v1045
        %v1047 = vmul.f32 %v1035, 1.442695
        %v1048 = vpow.pop %v1047
        %v1049 = vmul.f32 %v1036, 1.442695
        %v1050 = vpow.pop %v1049
        %v1051 = vmul.f32 %v1037, 1.442695
        %v1052 = vpow.pop %v1051
        %v1053 = vmul.f32 %v1038, 1.442695
        %v1054 = vpow.pop %v1053
        %v1055 = vadd.f32 %v1040, 1.0
        %v1056 = vadd.f32 %v1042, 1.0
        %v1057 = vadd.f32 %v1044, 1.0
        %v1058 = vadd.f32 %v1046, 1.0
        %v1059 = vadd.f32 %v1048, 1.0
        %v1060 = vadd.f32 %v1050, 1.0
        %v1061 = vadd.f32 %v1052, 1.0
        %v1062 = vadd.f32 %v1054, 1.0
        %v1063 = vrcp.pop %v1055
        %v1064 = vmul.f32 1.0, %v1063
        %v1065 = vrcp.pop %v1056
        %v1066 = vmul.f32 1.0, %v1065
        %v1067 = vrcp.pop %v1057
        %v1068 = vmul.f32 1.0, %v1067
        %v1069 = vrcp.pop %v1058
        %v1070 = vmul.f32 1.0, %v1069
        %v1071 = vrcp.pop %v1059
        %v1072 = vmul.f32 1.0, %v1071
        %v1073 = vrcp.pop %v1060
        %v1074 = vmul.f32 1.0, %v1073
        %v1075 = vrcp.pop %v1061
        %v1076 = vmul.f32 1.0, %v1075
        %v1077 = vrcp.pop %v1062
        %v1078 = vmul.f32 1.0, %v1077
        %v1079 = vmul.f32 %v1009, %v1064
        %v1080 = vmul.f32 %v1011, %v1066
        %v1081 = vmul.f32 %v1015, %v1068
        %v1082 = vmul.f32 %v1017, %v1070
        %v1083 = vmul.f32 %v1021, %v1072
        %v1084 = vmul.f32 %v1023, %v1074
        %v1085 = vmul.f32 %v1027, %v1076
        %v1086 = vmul.f32 %v1029, %v1078
        %1087 = vmatprep.subr.mxu0 0.0
        %1088 = vmatpush1.msra.mxu0 0.0
        %1089 = vmatprep.subr.mxu0 0.0
        %1090 = vmatpush1.msra.mxu0 0.0
        %1091 = vmatprep.subr.mxu0 0.0
        %1092 = vmatpush1.msra.mxu0 0.0
        %1093 = vmatprep.subr.mxu0 0.0
        %1094 = vmatpush1.msra.mxu0 0.0
        %1095 = vmatprep.subr.mxu0 0.0
        %1096 = vmatpush1.msra.mxu0 0.0
        %1097 = vmatprep.subr.mxu0 0.0
        %1098 = vmatpush1.msra.mxu0 0.0
        %1099 = vmatprep.subr.mxu0 0.0
        %1100 = vmatpush1.msra.mxu0 0.0
        %1101 = vmatprep.subr.mxu0 0.0
        %1102 = vmatpush1.msra.mxu0 0.0
        %1103 = vmatprep.subr.mxu0 0.0
        %1104 = vmatpush1.msra.mxu0 0.0
        %1105 = vmatprep.subr.mxu0 0.0
        %1106 = vmatpush1.msra.mxu0 0.0
        %1107 = vmatprep.subr.mxu0 0.0
        %1108 = vmatpush1.msra.mxu0 0.0
        %1109 = vmatprep.subr.mxu0 0.0
        %1110 = vmatpush1.msra.mxu0 0.0
        %1111 = vmatprep.subr.mxu0 %v1086
        %1112 = vmatpush1.msra.mxu0 %v1085
        %1113 = vmatprep.subr.mxu0 %v1084
        %1114 = vmatpush1.msra.mxu0 %v1083
        %1115 = vmatprep.subr.mxu0 %v1082
        %1116 = vmatpush1.msra.mxu0 %v1081
        %1117 = vmatprep.subr.mxu0 %v1080
        %1118 = vmatpush1.msra.mxu0 %v1079
        %1119 = vmatprep.subr.mxu0 0.0
        %1120 = vmatpush2.msra.mxu0 0.0
        %1121 = vmatprep.subr.mxu0 0.0
        %1122 = vmatpush2.msra.mxu0 0.0
        %1123 = vmatprep.subr.mxu0 0.0
        %1124 = vmatpush2.msra.mxu0 0.0
        %1125 = vmatprep.subr.mxu0 0.0
        %1126 = vmatpush2.msra.mxu0 0.0
        %1127 = vmatprep.subr.mxu0 0.0
        %1128 = vmatpush2.msra.mxu0 0.0
        %1129 = vmatprep.subr.mxu0 0.0
        %1130 = vmatpush2.msra.mxu0 0.0
        %1131 = vmatprep.subr.mxu0 0.0
        %1132 = vmatpush2.msra.mxu0 0.0
        %1133 = vmatprep.subr.mxu0 0.0
        %1134 = vmatpush2.msra.mxu0 0.0
        %1135 = vmatprep.subr.mxu0 0.0
        %1136 = vmatpush2.msra.mxu0 0.0
        %1137 = vmatprep.subr.mxu0 0.0
        %1138 = vmatpush2.msra.mxu0 0.0
        %1139 = vmatprep.subr.mxu0 0.0
        %1140 = vmatpush2.msra.mxu0 0.0
        %1141 = vmatprep.subr.mxu0 0.0
        %1142 = vmatpush2.msra.mxu0 0.0
        %1143 = vmatprep.subr.mxu0 0.0
        %1144 = vmatpush2.msra.mxu0 0.0
        %1145 = vmatprep.subr.mxu0 0.0
        %1146 = vmatpush2.msra.mxu0 0.0
        %1147 = vmatprep.subr.mxu0 0.0
        %1148 = vmatpush2.msra.mxu0 0.0
        %1149 = vmatprep.subr.mxu0 0.0
        %1150 = vmatpush2.msra.mxu0 0.0
        %1151 = vmatprep.mubr.f32.mxu0 0.0
        %1152 = vmatmul.mubr.f32.gmra.mxu0 %v630
        %v1153 = vpop.f32.mrf.mxu0
        %v1154 = vadd.f32 0.0, %v1153
        %v1155 = vpop.f32.mrf.mxu0
        %v1156 = vadd.f32 0.0, %v1155
        %1157 = vmatprep.mubr.f32.mxu0 0.0
        %1158 = vmatmul.mubr.f32.gmra.mxu0 %v633
        %v1159 = vpop.f32.mrf.mxu0
        %v1160 = vadd.f32 0.0, %v1159
        %v1161 = vpop.f32.mrf.mxu0
        %v1162 = vadd.f32 0.0, %v1161
        %1163 = vmatprep.mubr.f32.mxu0 0.0
        %1164 = vmatmul.mubr.f32.gmra.mxu0 %v636
        %v1165 = vpop.f32.mrf.mxu0
        %v1166 = vadd.f32 0.0, %v1165
        %v1167 = vpop.f32.mrf.mxu0
        %v1168 = vadd.f32 0.0, %v1167
        %1169 = vmatprep.mubr.f32.mxu0 0.0
        %1170 = vmatmul.mubr.f32.gmra.mxu0 %v639
        %v1171 = vpop.f32.mrf.mxu0
        %v1172 = vadd.f32 0.0, %v1171
        %v1173 = vpop.f32.mrf.mxu0
        %v1174 = vadd.f32 0.0, %v1173
        %1175 = vmatprep.mubr.f32.mxu0 0.0
        %1176 = vmatmul.mubr.f32.gmra.mxu0 %v642
        %v1177 = vpop.f32.mrf.mxu0
        %v1178 = vadd.f32 0.0, %v1177
        %v1179 = vpop.f32.mrf.mxu0
        %v1180 = vadd.f32 0.0, %v1179
        %1181 = vmatprep.mubr.f32.mxu0 0.0
        %1182 = vmatmul.mubr.f32.gmra.mxu0 %v645
        %v1183 = vpop.f32.mrf.mxu0
        %v1184 = vadd.f32 0.0, %v1183
        %v1185 = vpop.f32.mrf.mxu0
        %v1186 = vadd.f32 0.0, %v1185
        %1187 = vmatprep.mubr.f32.mxu0 0.0
        %1188 = vmatmul.mubr.f32.gmra.mxu0 %v648
        %v1189 = vpop.f32.mrf.mxu0
        %v1190 = vadd.f32 0.0, %v1189
        %v1191 = vpop.f32.mrf.mxu0
        %v1192 = vadd.f32 0.0, %v1191
        %1193 = vmatprep.mubr.f32.mxu0 0.0
        %1194 = vmatmul.mubr.f32.gmra.mxu0 %v651
        %v1195 = vpop.f32.mrf.mxu0
        %v1196 = vadd.f32 0.0, %v1195
        %v1197 = vpop.f32.mrf.mxu0
        %v1198 = vadd.f32 0.0, %v1197
        %1199 = vmatprep.mubr.f32.mxu0 0.0
        %1200 = vmatmul.mubr.f32.gmra.mxu0 %v654
        %v1201 = vpop.f32.mrf.mxu0
        %v1202 = vadd.f32 0.0, %v1201
        %v1203 = vpop.f32.mrf.mxu0
        %v1204 = vadd.f32 0.0, %v1203
        %1205 = vdwg.mxu0
        %1206 = vrot.lane.b32.xlu0 %v1154, 17
        %v1207 = vpop.permute.xlu0 %1206
        %1208 = vrot.lane.b32.xlu0 %v1156, 17
        %v1209 = vpop.permute.xlu0 %1208
        %v1210 = vsel %vm392, %v1207, %v1209
        %v1211 = vsel %vm392, %v1209, %v1207
        %v1212 = vmul.f32 %v1211, %v346
        %v1213 = vmul.f32 %v1210, %v347
        %v1214 = vadd.f32 %v1178, %v1212
        %v1215 = vadd.f32 %v1180, %v1213
        %1216 = vrot.lane.b32.xlu0 %v1160, 16
        %v1217 = vpop.permute.xlu0 %1216
        %1218 = vrot.lane.b32.xlu0 %v1162, 16
        %v1219 = vpop.permute.xlu0 %1218
        %v1220 = vsel %vm399, %v1217, %v1219
        %v1221 = vsel %vm399, %v1219, %v1217
        %v1222 = vmul.f32 %v1221, %v348
        %v1223 = vmul.f32 %v1220, %v349
        %v1224 = vadd.f32 %v1214, %v1222
        %v1225 = vadd.f32 %v1215, %v1223
        %1226 = vrot.lane.b32.xlu0 %v1166, 15
        %v1227 = vpop.permute.xlu0 %1226
        %1228 = vrot.lane.b32.xlu0 %v1168, 15
        %v1229 = vpop.permute.xlu0 %1228
        %v1230 = vsel %vm406, %v1227, %v1229
        %v1231 = vsel %vm406, %v1229, %v1227
        %v1232 = vmul.f32 %v1231, %v350
        %v1233 = vmul.f32 %v1230, %v351
        %v1234 = vadd.f32 %v1224, %v1232
        %v1235 = vadd.f32 %v1225, %v1233
        %1236 = vrot.lane.b32.xlu0 %v1172, 1
        %v1237 = vpop.permute.xlu0 %1236
        %1238 = vrot.lane.b32.xlu0 %v1174, 1
        %v1239 = vpop.permute.xlu0 %1238
        %v1240 = vsel %vm413, %v1237, %v1239
        %v1241 = vsel %vm413, %v1239, %v1237
        %v1242 = vmul.f32 %v1241, %v352
        %v1243 = vmul.f32 %v1240, %v353
        %v1244 = vadd.f32 %v1234, %v1242
        %v1245 = vadd.f32 %v1235, %v1243
        %1246 = vrot.lane.b32.xlu0 %v1184, 127
        %v1247 = vpop.permute.xlu0 %1246
        %1248 = vrot.lane.b32.xlu0 %v1186, 127
        %v1249 = vpop.permute.xlu0 %1248
        %v1250 = vsel %vm420, %v1247, %v1249
        %v1251 = vsel %vm420, %v1249, %v1247
        %v1252 = vmul.f32 %v1250, %v356
        %v1253 = vmul.f32 %v1251, %v357
        %v1254 = vadd.f32 %v1244, %v1252
        %v1255 = vadd.f32 %v1245, %v1253
        %1256 = vrot.lane.b32.xlu0 %v1190, 113
        %v1257 = vpop.permute.xlu0 %1256
        %1258 = vrot.lane.b32.xlu0 %v1192, 113
        %v1259 = vpop.permute.xlu0 %1258
        %v1260 = vsel %vm427, %v1257, %v1259
        %v1261 = vsel %vm427, %v1259, %v1257
        %v1262 = vmul.f32 %v1260, %v358
        %v1263 = vmul.f32 %v1261, %v359
        %v1264 = vadd.f32 %v1254, %v1262
        %v1265 = vadd.f32 %v1255, %v1263
        %1266 = vrot.lane.b32.xlu0 %v1196, 112
        %v1267 = vpop.permute.xlu0 %1266
        %1268 = vrot.lane.b32.xlu0 %v1198, 112
        %v1269 = vpop.permute.xlu0 %1268
        %v1270 = vsel %vm434, %v1267, %v1269
        %v1271 = vsel %vm434, %v1269, %v1267
        %v1272 = vmul.f32 %v1270, %v360
        %v1273 = vmul.f32 %v1271, %v361
        %v1274 = vadd.f32 %v1264, %v1272
        %v1275 = vadd.f32 %v1265, %v1273
        %1276 = vrot.lane.b32.xlu0 %v1202, 111
        %v1277 = vpop.permute.xlu0 %1276
        %1278 = vrot.lane.b32.xlu0 %v1204, 111
        %v1279 = vpop.permute.xlu0 %1278
        %v1280 = vsel %vm441, %v1277, %v1279
        %v1281 = vsel %vm441, %v1279, %v1277
        %v1282 = vmul.f32 %v1280, %v362
        %v1283 = vmul.f32 %v1281, %v363
        %v1284 = vadd.f32 %v1274, %v1282
        %v1285 = vadd.f32 %v1275, %v1283
        %v1286 = vadd.f32 %v1284, %v377
        %v1287 = vadd.f32 %v1285, %v378
        %v1288 = vstv %s863
        %v1289 = vmul.f32 %v1286, %v1288
        %v1290 = vmul.f32 %v1287, %v1288
        %v1291 = vadd.f32 %v860, %v1289
        %v1292 = vadd.f32 %v861, %v1290
        %s1293 = sld [smem:[#allocation2 + $0x100]]
        %s1294 = sld [smem:[#allocation2 + $0x101]]
        %v1295 = vstv %s1293
        %v1296 = vmul.f32 %v1291, %v1295
        %v1297 = vmul.f32 %v1292, %v1295
        %1298 = vrot.lane.b32.xlu0 %v1296, 17
        %v1299 = vpop.permute.xlu0 %1298
        %1300 = vrot.lane.b32.xlu0 %v1297, 17
        %v1301 = vpop.permute.xlu0 %1300
        %v1302 = vsel %vm392, %v1299, %v1301
        %v1303 = vsel %vm392, %v1301, %v1299
        %1304 = vrot.lane.b32.xlu0 %v1296, 16
        %v1305 = vpop.permute.xlu0 %1304
        %1306 = vrot.lane.b32.xlu0 %v1297, 16
        %v1307 = vpop.permute.xlu0 %1306
        %v1308 = vsel %vm399, %v1305, %v1307
        %v1309 = vsel %vm399, %v1307, %v1305
        %1310 = vrot.lane.b32.xlu0 %v1296, 15
        %v1311 = vpop.permute.xlu0 %1310
        %1312 = vrot.lane.b32.xlu0 %v1297, 15
        %v1313 = vpop.permute.xlu0 %1312
        %v1314 = vsel %vm406, %v1311, %v1313
        %v1315 = vsel %vm406, %v1313, %v1311
        %1316 = vrot.lane.b32.xlu0 %v1296, 1
        %v1317 = vpop.permute.xlu0 %1316
        %1318 = vrot.lane.b32.xlu0 %v1297, 1
        %v1319 = vpop.permute.xlu0 %1318
        %v1320 = vsel %vm413, %v1317, %v1319
        %v1321 = vsel %vm413, %v1319, %v1317
        %1322 = vrot.lane.b32.xlu0 %v1296, 127
        %v1323 = vpop.permute.xlu0 %1322
        %1324 = vrot.lane.b32.xlu0 %v1297, 127
        %v1325 = vpop.permute.xlu0 %1324
        %v1326 = vsel %vm420, %v1323, %v1325
        %v1327 = vsel %vm420, %v1325, %v1323
        %1328 = vrot.lane.b32.xlu0 %v1296, 113
        %v1329 = vpop.permute.xlu0 %1328
        %1330 = vrot.lane.b32.xlu0 %v1297, 113
        %v1331 = vpop.permute.xlu0 %1330
        %v1332 = vsel %vm427, %v1329, %v1331
        %v1333 = vsel %vm427, %v1331, %v1329
        %1334 = vrot.lane.b32.xlu0 %v1296, 112
        %v1335 = vpop.permute.xlu0 %1334
        %1336 = vrot.lane.b32.xlu0 %v1297, 112
        %v1337 = vpop.permute.xlu0 %1336
        %v1338 = vsel %vm434, %v1335, %v1337
        %v1339 = vsel %vm434, %v1337, %v1335
        %1340 = vrot.lane.b32.xlu0 %v1296, 111
        %v1341 = vpop.permute.xlu0 %1340
        %1342 = vrot.lane.b32.xlu0 %v1297, 111
        %v1343 = vpop.permute.xlu0 %1342
        %v1344 = vsel %vm441, %v1341, %v1343
        %v1345 = vsel %vm441, %v1343, %v1341
        %v1346 = vmul.f32 %v1303, %v346
        %v1347 = vmul.f32 %v1302, %v347
        %v1348 = vmul.f32 %v1309, %v348
        %v1349 = vmul.f32 %v1308, %v349
        %v1350 = vmul.f32 %v1315, %v350
        %v1351 = vmul.f32 %v1314, %v351
        %v1352 = vmul.f32 %v1321, %v352
        %v1353 = vmul.f32 %v1320, %v353
        %v1354 = vmul.f32 %v1296, %v354
        %v1355 = vmul.f32 %v1297, %v355
        %v1356 = vmul.f32 %v1326, %v356
        %v1357 = vmul.f32 %v1327, %v357
        %v1358 = vmul.f32 %v1332, %v358
        %v1359 = vmul.f32 %v1333, %v359
        %v1360 = vmul.f32 %v1338, %v360
        %v1361 = vmul.f32 %v1339, %v361
        %v1362 = vmul.f32 %v1344, %v362
        %v1363 = vmul.f32 %v1345, %v363
        %s1364 = scalar_lea.vmem %s300, 128 [#allocation6]
        %v1365 = vld [vmem:[%s1364] sm:$0xff]
        %v1366 = vld [vmem:[%s1364 + $0x8] sm:$0xff]
        %v1367 = vld [vmem:[%s1364 + $0x10] sm:$0xff]
        %v1368 = vld [vmem:[%s1364 + $0x18] sm:$0xff]
        %v1369 = vld [vmem:[%s1364 + $0x20] sm:$0xff]
        %v1370 = vld [vmem:[%s1364 + $0x28] sm:$0xff]
        %v1371 = vld [vmem:[%s1364 + $0x30] sm:$0xff]
        %v1372 = vld [vmem:[%s1364 + $0x38] sm:$0xff]
        %1373 = vmatprep.subr.mxu0 0.0
        %1374 = vmatpush1.msra.mxu0 0.0
        %1375 = vmatprep.subr.mxu0 0.0
        %1376 = vmatpush1.msra.mxu0 0.0
        %1377 = vmatprep.subr.mxu0 0.0
        %1378 = vmatpush1.msra.mxu0 0.0
        %1379 = vmatprep.subr.mxu0 0.0
        %1380 = vmatpush1.msra.mxu0 0.0
        %1381 = vmatprep.subr.mxu0 0.0
        %1382 = vmatpush1.msra.mxu0 0.0
        %1383 = vmatprep.subr.mxu0 0.0
        %1384 = vmatpush1.msra.mxu0 0.0
        %1385 = vmatprep.subr.mxu0 0.0
        %1386 = vmatpush1.msra.mxu0 0.0
        %1387 = vmatprep.subr.mxu0 %v1363
        %1388 = vmatpush1.msra.mxu0 %v1362
        %1389 = vmatprep.subr.mxu0 %v1361
        %1390 = vmatpush1.msra.mxu0 %v1360
        %1391 = vmatprep.subr.mxu0 %v1359
        %1392 = vmatpush1.msra.mxu0 %v1358
        %1393 = vmatprep.subr.mxu0 %v1357
        %1394 = vmatpush1.msra.mxu0 %v1356
        %1395 = vmatprep.subr.mxu0 %v1355
        %1396 = vmatpush1.msra.mxu0 %v1354
        %1397 = vmatprep.subr.mxu0 %v1353
        %1398 = vmatpush1.msra.mxu0 %v1352
        %1399 = vmatprep.subr.mxu0 %v1351
        %1400 = vmatpush1.msra.mxu0 %v1350
        %1401 = vmatprep.subr.mxu0 %v1349
        %1402 = vmatpush1.msra.mxu0 %v1348
        %1403 = vmatprep.subr.mxu0 %v1347
        %1404 = vmatpush1.msra.mxu0 %v1346
        %1405 = vmatprep.subr.mxu0 0.0
        %1406 = vmatpush2.msra.mxu0 0.0
        %1407 = vmatprep.subr.mxu0 0.0
        %1408 = vmatpush2.msra.mxu0 0.0
        %1409 = vmatprep.subr.mxu0 0.0
        %1410 = vmatpush2.msra.mxu0 0.0
        %1411 = vmatprep.subr.mxu0 0.0
        %1412 = vmatpush2.msra.mxu0 0.0
        %1413 = vmatprep.subr.mxu0 0.0
        %1414 = vmatpush2.msra.mxu0 0.0
        %1415 = vmatprep.subr.mxu0 0.0
        %1416 = vmatpush2.msra.mxu0 0.0
        %1417 = vmatprep.subr.mxu0 0.0
        %1418 = vmatpush2.msra.mxu0 0.0
        %1419 = vmatprep.subr.mxu0 0.0
        %1420 = vmatpush2.msra.mxu0 0.0
        %1421 = vmatprep.subr.mxu0 0.0
        %1422 = vmatpush2.msra.mxu0 0.0
        %1423 = vmatprep.subr.mxu0 0.0
        %1424 = vmatpush2.msra.mxu0 0.0
        %1425 = vmatprep.subr.mxu0 0.0
        %1426 = vmatpush2.msra.mxu0 0.0
        %1427 = vmatprep.subr.mxu0 0.0
        %1428 = vmatpush2.msra.mxu0 0.0
        %1429 = vmatprep.subr.mxu0 0.0
        %1430 = vmatpush2.msra.mxu0 0.0
        %1431 = vmatprep.subr.mxu0 0.0
        %1432 = vmatpush2.msra.mxu0 0.0
        %1433 = vmatprep.subr.mxu0 0.0
        %1434 = vmatpush2.msra.mxu0 0.0
        %1435 = vmatprep.subr.mxu0 0.0
        %1436 = vmatpush2.msra.mxu0 0.0
        %1437 = vmatprep.mubr.f32.mxu0 0.0
        %1438 = vmatmul.mubr.f32.gmra.mxu0 %v472
        %v1439 = vpop.f32.mrf.mxu0
        %v1440 = vadd.f32 %v1365, %v1439
        %v1441 = vpop.f32.mrf.mxu0
        %v1442 = vadd.f32 %v1366, %v1441
        %1443 = vmatprep.mubr.f32.mxu0 0.0
        %1444 = vmatmul.mubr.f32.gmra.mxu0 %v475
        %v1445 = vpop.f32.mrf.mxu0
        %v1446 = vadd.f32 %v1367, %v1445
        %v1447 = vpop.f32.mrf.mxu0
        %v1448 = vadd.f32 %v1368, %v1447
        %1449 = vmatprep.mubr.f32.mxu0 0.0
        %1450 = vmatmul.mubr.f32.gmra.mxu0 %v478
        %v1451 = vpop.f32.mrf.mxu0
        %v1452 = vadd.f32 %v1369, %v1451
        %v1453 = vpop.f32.mrf.mxu0
        %v1454 = vadd.f32 %v1370, %v1453
        %1455 = vmatprep.mubr.f32.mxu0 0.0
        %1456 = vmatmul.mubr.f32.gmra.mxu0 %v481
        %v1457 = vpop.f32.mrf.mxu0
        %v1458 = vadd.f32 %v1371, %v1457
        %v1459 = vpop.f32.mrf.mxu0
        %v1460 = vadd.f32 %v1372, %v1459
        %1461 = vdwg.mxu0
        %v1462 = vxor.u32 %v1440, 2147483648
        %v1463 = vxor.u32 %v1442, 2147483648
        %v1464 = vxor.u32 %v1446, 2147483648
        %v1465 = vxor.u32 %v1448, 2147483648
        %v1466 = vxor.u32 %v1452, 2147483648
        %v1467 = vxor.u32 %v1454, 2147483648
        %v1468 = vxor.u32 %v1458, 2147483648
        %v1469 = vxor.u32 %v1460, 2147483648
        %v1470 = vmul.f32 %v1462, 1.442695
        %v1471 = vpow.pop %v1470
        %v1472 = vmul.f32 %v1463, 1.442695
        %v1473 = vpow.pop %v1472
        %v1474 = vmul.f32 %v1464, 1.442695
        %v1475 = vpow.pop %v1474
        %v1476 = vmul.f32 %v1465, 1.442695
        %v1477 = vpow.pop %v1476
        %v1478 = vmul.f32 %v1466, 1.442695
        %v1479 = vpow.pop %v1478
        %v1480 = vmul.f32 %v1467, 1.442695
        %v1481 = vpow.pop %v1480
        %v1482 = vmul.f32 %v1468, 1.442695
        %v1483 = vpow.pop %v1482
        %v1484 = vmul.f32 %v1469, 1.442695
        %v1485 = vpow.pop %v1484
        %v1486 = vadd.f32 %v1471, 1.0
        %v1487 = vadd.f32 %v1473, 1.0
        %v1488 = vadd.f32 %v1475, 1.0
        %v1489 = vadd.f32 %v1477, 1.0
        %v1490 = vadd.f32 %v1479, 1.0
        %v1491 = vadd.f32 %v1481, 1.0
        %v1492 = vadd.f32 %v1483, 1.0
        %v1493 = vadd.f32 %v1485, 1.0
        %v1494 = vrcp.pop %v1486
        %v1495 = vmul.f32 1.0, %v1494
        %v1496 = vrcp.pop %v1487
        %v1497 = vmul.f32 1.0, %v1496
        %v1498 = vrcp.pop %v1488
        %v1499 = vmul.f32 1.0, %v1498
        %v1500 = vrcp.pop %v1489
        %v1501 = vmul.f32 1.0, %v1500
        %v1502 = vrcp.pop %v1490
        %v1503 = vmul.f32 1.0, %v1502
        %v1504 = vrcp.pop %v1491
        %v1505 = vmul.f32 1.0, %v1504
        %v1506 = vrcp.pop %v1492
        %v1507 = vmul.f32 1.0, %v1506
        %v1508 = vrcp.pop %v1493
        %v1509 = vmul.f32 1.0, %v1508
        %v1510 = vmul.f32 %v1440, %v1495
        %v1511 = vmul.f32 %v1442, %v1497
        %v1512 = vmul.f32 %v1446, %v1499
        %v1513 = vmul.f32 %v1448, %v1501
        %v1514 = vmul.f32 %v1452, %v1503
        %v1515 = vmul.f32 %v1454, %v1505
        %v1516 = vmul.f32 %v1458, %v1507
        %v1517 = vmul.f32 %v1460, %v1509
        %1518 = vmatprep.subr.mxu0 0.0
        %1519 = vmatpush1.msra.mxu0 0.0
        %1520 = vmatprep.subr.mxu0 0.0
        %1521 = vmatpush1.msra.mxu0 0.0
        %1522 = vmatprep.subr.mxu0 0.0
        %1523 = vmatpush1.msra.mxu0 0.0
        %1524 = vmatprep.subr.mxu0 0.0
        %1525 = vmatpush1.msra.mxu0 0.0
        %1526 = vmatprep.subr.mxu0 0.0
        %1527 = vmatpush1.msra.mxu0 0.0
        %1528 = vmatprep.subr.mxu0 0.0
        %1529 = vmatpush1.msra.mxu0 0.0
        %1530 = vmatprep.subr.mxu0 0.0
        %1531 = vmatpush1.msra.mxu0 0.0
        %1532 = vmatprep.subr.mxu0 0.0
        %1533 = vmatpush1.msra.mxu0 0.0
        %1534 = vmatprep.subr.mxu0 0.0
        %1535 = vmatpush1.msra.mxu0 0.0
        %1536 = vmatprep.subr.mxu0 0.0
        %1537 = vmatpush1.msra.mxu0 0.0
        %1538 = vmatprep.subr.mxu0 0.0
        %1539 = vmatpush1.msra.mxu0 0.0
        %1540 = vmatprep.subr.mxu0 0.0
        %1541 = vmatpush1.msra.mxu0 0.0
        %1542 = vmatprep.subr.mxu0 %v1517
        %1543 = vmatpush1.msra.mxu0 %v1516
        %1544 = vmatprep.subr.mxu0 %v1515
        %1545 = vmatpush1.msra.mxu0 %v1514
        %1546 = vmatprep.subr.mxu0 %v1513
        %1547 = vmatpush1.msra.mxu0 %v1512
        %1548 = vmatprep.subr.mxu0 %v1511
        %1549 = vmatpush1.msra.mxu0 %v1510
        %1550 = vmatprep.subr.mxu0 0.0
        %1551 = vmatpush2.msra.mxu0 0.0
        %1552 = vmatprep.subr.mxu0 0.0
        %1553 = vmatpush2.msra.mxu0 0.0
        %1554 = vmatprep.subr.mxu0 0.0
        %1555 = vmatpush2.msra.mxu0 0.0
        %1556 = vmatprep.subr.mxu0 0.0
        %1557 = vmatpush2.msra.mxu0 0.0
        %1558 = vmatprep.subr.mxu0 0.0
        %1559 = vmatpush2.msra.mxu0 0.0
        %1560 = vmatprep.subr.mxu0 0.0
        %1561 = vmatpush2.msra.mxu0 0.0
        %1562 = vmatprep.subr.mxu0 0.0
        %1563 = vmatpush2.msra.mxu0 0.0
        %1564 = vmatprep.subr.mxu0 0.0
        %1565 = vmatpush2.msra.mxu0 0.0
        %1566 = vmatprep.subr.mxu0 0.0
        %1567 = vmatpush2.msra.mxu0 0.0
        %1568 = vmatprep.subr.mxu0 0.0
        %1569 = vmatpush2.msra.mxu0 0.0
        %1570 = vmatprep.subr.mxu0 0.0
        %1571 = vmatpush2.msra.mxu0 0.0
        %1572 = vmatprep.subr.mxu0 0.0
        %1573 = vmatpush2.msra.mxu0 0.0
        %1574 = vmatprep.subr.mxu0 0.0
        %1575 = vmatpush2.msra.mxu0 0.0
        %1576 = vmatprep.subr.mxu0 0.0
        %1577 = vmatpush2.msra.mxu0 0.0
        %1578 = vmatprep.subr.mxu0 0.0
        %1579 = vmatpush2.msra.mxu0 0.0
        %1580 = vmatprep.subr.mxu0 0.0
        %1581 = vmatpush2.msra.mxu0 0.0
        %1582 = vmatprep.mubr.f32.mxu0 0.0
        %1583 = vmatmul.mubr.f32.gmra.mxu0 %v630
        %v1584 = vpop.f32.mrf.mxu0
        %v1585 = vadd.f32 0.0, %v1584
        %v1586 = vpop.f32.mrf.mxu0
        %v1587 = vadd.f32 0.0, %v1586
        %1588 = vmatprep.mubr.f32.mxu0 0.0
        %1589 = vmatmul.mubr.f32.gmra.mxu0 %v633
        %v1590 = vpop.f32.mrf.mxu0
        %v1591 = vadd.f32 0.0, %v1590
        %v1592 = vpop.f32.mrf.mxu0
        %v1593 = vadd.f32 0.0, %v1592
        %1594 = vmatprep.mubr.f32.mxu0 0.0
        %1595 = vmatmul.mubr.f32.gmra.mxu0 %v636
        %v1596 = vpop.f32.mrf.mxu0
        %v1597 = vadd.f32 0.0, %v1596
        %v1598 = vpop.f32.mrf.mxu0
        %v1599 = vadd.f32 0.0, %v1598
        %1600 = vmatprep.mubr.f32.mxu0 0.0
        %1601 = vmatmul.mubr.f32.gmra.mxu0 %v639
        %v1602 = vpop.f32.mrf.mxu0
        %v1603 = vadd.f32 0.0, %v1602
        %v1604 = vpop.f32.mrf.mxu0
        %v1605 = vadd.f32 0.0, %v1604
        %1606 = vmatprep.mubr.f32.mxu0 0.0
        %1607 = vmatmul.mubr.f32.gmra.mxu0 %v642
        %v1608 = vpop.f32.mrf.mxu0
        %v1609 = vadd.f32 0.0, %v1608
        %v1610 = vpop.f32.mrf.mxu0
        %v1611 = vadd.f32 0.0, %v1610
        %1612 = vmatprep.mubr.f32.mxu0 0.0
        %1613 = vmatmul.mubr.f32.gmra.mxu0 %v645
        %v1614 = vpop.f32.mrf.mxu0
        %v1615 = vadd.f32 0.0, %v1614
        %v1616 = vpop.f32.mrf.mxu0
        %v1617 = vadd.f32 0.0, %v1616
        %1618 = vmatprep.mubr.f32.mxu0 0.0
        %1619 = vmatmul.mubr.f32.gmra.mxu0 %v648
        %v1620 = vpop.f32.mrf.mxu0
        %v1621 = vadd.f32 0.0, %v1620
        %v1622 = vpop.f32.mrf.mxu0
        %v1623 = vadd.f32 0.0, %v1622
        %1624 = vmatprep.mubr.f32.mxu0 0.0
        %1625 = vmatmul.mubr.f32.gmra.mxu0 %v651
        %v1626 = vpop.f32.mrf.mxu0
        %v1627 = vadd.f32 0.0, %v1626
        %v1628 = vpop.f32.mrf.mxu0
        %v1629 = vadd.f32 0.0, %v1628
        %1630 = vmatprep.mubr.f32.mxu0 0.0
        %1631 = vmatmul.mubr.f32.gmra.mxu0 %v654
        %v1632 = vpop.f32.mrf.mxu0
        %v1633 = vadd.f32 0.0, %v1632
        %v1634 = vpop.f32.mrf.mxu0
        %v1635 = vadd.f32 0.0, %v1634
        %1636 = vdwg.mxu0
        %1637 = vrot.lane.b32.xlu0 %v1585, 17
        %v1638 = vpop.permute.xlu0 %1637
        %1639 = vrot.lane.b32.xlu0 %v1587, 17
        %v1640 = vpop.permute.xlu0 %1639
        %v1641 = vsel %vm392, %v1638, %v1640
        %v1642 = vsel %vm392, %v1640, %v1638
        %v1643 = vmul.f32 %v1642, %v346
        %v1644 = vmul.f32 %v1641, %v347
        %v1645 = vadd.f32 %v1609, %v1643
        %v1646 = vadd.f32 %v1611, %v1644
        %1647 = vrot.lane.b32.xlu0 %v1591, 16
        %v1648 = vpop.permute.xlu0 %1647
        %1649 = vrot.lane.b32.xlu0 %v1593, 16
        %v1650 = vpop.permute.xlu0 %1649
        %v1651 = vsel %vm399, %v1648, %v1650
        %v1652 = vsel %vm399, %v1650, %v1648
        %v1653 = vmul.f32 %v1652, %v348
        %v1654 = vmul.f32 %v1651, %v349
        %v1655 = vadd.f32 %v1645, %v1653
        %v1656 = vadd.f32 %v1646, %v1654
        %1657 = vrot.lane.b32.xlu0 %v1597, 15
        %v1658 = vpop.permute.xlu0 %1657
        %1659 = vrot.lane.b32.xlu0 %v1599, 15
        %v1660 = vpop.permute.xlu0 %1659
        %v1661 = vsel %vm406, %v1658, %v1660
        %v1662 = vsel %vm406, %v1660, %v1658
        %v1663 = vmul.f32 %v1662, %v350
        %v1664 = vmul.f32 %v1661, %v351
        %v1665 = vadd.f32 %v1655, %v1663
        %v1666 = vadd.f32 %v1656, %v1664
        %1667 = vrot.lane.b32.xlu0 %v1603, 1
        %v1668 = vpop.permute.xlu0 %1667
        %1669 = vrot.lane.b32.xlu0 %v1605, 1
        %v1670 = vpop.permute.xlu0 %1669
        %v1671 = vsel %vm413, %v1668, %v1670
        %v1672 = vsel %vm413, %v1670, %v1668
        %v1673 = vmul.f32 %v1672, %v352
        %v1674 = vmul.f32 %v1671, %v353
        %v1675 = vadd.f32 %v1665, %v1673
        %v1676 = vadd.f32 %v1666, %v1674
        %1677 = vrot.lane.b32.xlu0 %v1615, 127
        %v1678 = vpop.permute.xlu0 %1677
        %1679 = vrot.lane.b32.xlu0 %v1617, 127
        %v1680 = vpop.permute.xlu0 %1679
        %v1681 = vsel %vm420, %v1678, %v1680
        %v1682 = vsel %vm420, %v1680, %v1678
        %v1683 = vmul.f32 %v1681, %v356
        %v1684 = vmul.f32 %v1682, %v357
        %v1685 = vadd.f32 %v1675, %v1683
        %v1686 = vadd.f32 %v1676, %v1684
        %1687 = vrot.lane.b32.xlu0 %v1621, 113
        %v1688 = vpop.permute.xlu0 %1687
        %1689 = vrot.lane.b32.xlu0 %v1623, 113
        %v1690 = vpop.permute.xlu0 %1689
        %v1691 = vsel %vm427, %v1688, %v1690
        %v1692 = vsel %vm427, %v1690, %v1688
        %v1693 = vmul.f32 %v1691, %v358
        %v1694 = vmul.f32 %v1692, %v359
        %v1695 = vadd.f32 %v1685, %v1693
        %v1696 = vadd.f32 %v1686, %v1694
        %1697 = vrot.lane.b32.xlu0 %v1627, 112
        %v1698 = vpop.permute.xlu0 %1697
        %1699 = vrot.lane.b32.xlu0 %v1629, 112
        %v1700 = vpop.permute.xlu0 %1699
        %v1701 = vsel %vm434, %v1698, %v1700
        %v1702 = vsel %vm434, %v1700, %v1698
        %v1703 = vmul.f32 %v1701, %v360
        %v1704 = vmul.f32 %v1702, %v361
        %v1705 = vadd.f32 %v1695, %v1703
        %v1706 = vadd.f32 %v1696, %v1704
        %1707 = vrot.lane.b32.xlu0 %v1633, 111
        %v1708 = vpop.permute.xlu0 %1707
        %1709 = vrot.lane.b32.xlu0 %v1635, 111
        %v1710 = vpop.permute.xlu0 %1709
        %v1711 = vsel %vm441, %v1708, %v1710
        %v1712 = vsel %vm441, %v1710, %v1708
        %v1713 = vmul.f32 %v1711, %v362
        %v1714 = vmul.f32 %v1712, %v363
        %v1715 = vadd.f32 %v1705, %v1713
        %v1716 = vadd.f32 %v1706, %v1714
        %v1717 = vadd.f32 %v1715, %v377
        %v1718 = vadd.f32 %v1716, %v378
        %v1719 = vstv %s1294
        %v1720 = vmul.f32 %v1717, %v1719
        %v1721 = vmul.f32 %v1718, %v1719
        %v1722 = vadd.f32 %v1291, %v1720
        %v1723 = vadd.f32 %v1292, %v1721
        %s1724 = sld [smem:[#allocation2 + $0x180]]
        %s1725 = sld [smem:[#allocation2 + $0x181]]
        %v1726 = vstv %s1724
        %v1727 = vmul.f32 %v1722, %v1726
        %v1728 = vmul.f32 %v1723, %v1726
        %1729 = vrot.lane.b32.xlu0 %v1727, 17
        %v1730 = vpop.permute.xlu0 %1729
        %1731 = vrot.lane.b32.xlu0 %v1728, 17
        %v1732 = vpop.permute.xlu0 %1731
        %v1733 = vsel %vm392, %v1730, %v1732
        %v1734 = vsel %vm392, %v1732, %v1730
        %1735 = vrot.lane.b32.xlu0 %v1727, 16
        %v1736 = vpop.permute.xlu0 %1735
        %1737 = vrot.lane.b32.xlu0 %v1728, 16
        %v1738 = vpop.permute.xlu0 %1737
        %v1739 = vsel %vm399, %v1736, %v1738
        %v1740 = vsel %vm399, %v1738, %v1736
        %1741 = vrot.lane.b32.xlu0 %v1727, 15
        %v1742 = vpop.permute.xlu0 %1741
        %1743 = vrot.lane.b32.xlu0 %v1728, 15
        %v1744 = vpop.permute.xlu0 %1743
        %v1745 = vsel %vm406, %v1742, %v1744
        %v1746 = vsel %vm406, %v1744, %v1742
        %1747 = vrot.lane.b32.xlu0 %v1727, 1
        %v1748 = vpop.permute.xlu0 %1747
        %1749 = vrot.lane.b32.xlu0 %v1728, 1
        %v1750 = vpop.permute.xlu0 %1749
        %v1751 = vsel %vm413, %v1748, %v1750
        %v1752 = vsel %vm413, %v1750, %v1748
        %1753 = vrot.lane.b32.xlu0 %v1727, 127
        %v1754 = vpop.permute.xlu0 %1753
        %1755 = vrot.lane.b32.xlu0 %v1728, 127
        %v1756 = vpop.permute.xlu0 %1755
        %v1757 = vsel %vm420, %v1754, %v1756
        %v1758 = vsel %vm420, %v1756, %v1754
        %1759 = vrot.lane.b32.xlu0 %v1727, 113
        %v1760 = vpop.permute.xlu0 %1759
        %1761 = vrot.lane.b32.xlu0 %v1728, 113
        %v1762 = vpop.permute.xlu0 %1761
        %v1763 = vsel %vm427, %v1760, %v1762
        %v1764 = vsel %vm427, %v1762, %v1760
        %1765 = vrot.lane.b32.xlu0 %v1727, 112
        %v1766 = vpop.permute.xlu0 %1765
        %1767 = vrot.lane.b32.xlu0 %v1728, 112
        %v1768 = vpop.permute.xlu0 %1767
        %v1769 = vsel %vm434, %v1766, %v1768
        %v1770 = vsel %vm434, %v1768, %v1766
        %1771 = vrot.lane.b32.xlu0 %v1727, 111
        %v1772 = vpop.permute.xlu0 %1771
        %1773 = vrot.lane.b32.xlu0 %v1728, 111
        %v1774 = vpop.permute.xlu0 %1773
        %v1775 = vsel %vm441, %v1772, %v1774
        %v1776 = vsel %vm441, %v1774, %v1772
        %v1777 = vmul.f32 %v1734, %v346
        %v1778 = vmul.f32 %v1733, %v347
        %v1779 = vmul.f32 %v1740, %v348
        %v1780 = vmul.f32 %v1739, %v349
        %v1781 = vmul.f32 %v1746, %v350
        %v1782 = vmul.f32 %v1745, %v351
        %v1783 = vmul.f32 %v1752, %v352
        %v1784 = vmul.f32 %v1751, %v353
        %v1785 = vmul.f32 %v1727, %v354
        %v1786 = vmul.f32 %v1728, %v355
        %v1787 = vmul.f32 %v1757, %v356
        %v1788 = vmul.f32 %v1758, %v357
        %v1789 = vmul.f32 %v1763, %v358
        %v1790 = vmul.f32 %v1764, %v359
        %v1791 = vmul.f32 %v1769, %v360
        %v1792 = vmul.f32 %v1770, %v361
        %v1793 = vmul.f32 %v1775, %v362
        %v1794 = vmul.f32 %v1776, %v363
        %s1795 = scalar_lea.vmem %s300, 192 [#allocation6]
        %v1796 = vld [vmem:[%s1795] sm:$0xff]
        %v1797 = vld [vmem:[%s1795 + $0x8] sm:$0xff]
        %v1798 = vld [vmem:[%s1795 + $0x10] sm:$0xff]
        %v1799 = vld [vmem:[%s1795 + $0x18] sm:$0xff]
        %v1800 = vld [vmem:[%s1795 + $0x20] sm:$0xff]
        %v1801 = vld [vmem:[%s1795 + $0x28] sm:$0xff]
        %v1802 = vld [vmem:[%s1795 + $0x30] sm:$0xff]
        %v1803 = vld [vmem:[%s1795 + $0x38] sm:$0xff]
        %1804 = vmatprep.subr.mxu0 0.0
        %1805 = vmatpush1.msra.mxu0 0.0
        %1806 = vmatprep.subr.mxu0 0.0
        %1807 = vmatpush1.msra.mxu0 0.0
        %1808 = vmatprep.subr.mxu0 0.0
        %1809 = vmatpush1.msra.mxu0 0.0
        %1810 = vmatprep.subr.mxu0 0.0
        %1811 = vmatpush1.msra.mxu0 0.0
        %1812 = vmatprep.subr.mxu0 0.0
        %1813 = vmatpush1.msra.mxu0 0.0
        %1814 = vmatprep.subr.mxu0 0.0
        %1815 = vmatpush1.msra.mxu0 0.0
        %1816 = vmatprep.subr.mxu0 0.0
        %1817 = vmatpush1.msra.mxu0 0.0
        %1818 = vmatprep.subr.mxu0 %v1794
        %1819 = vmatpush1.msra.mxu0 %v1793
        %1820 = vmatprep.subr.mxu0 %v1792
        %1821 = vmatpush1.msra.mxu0 %v1791
        %1822 = vmatprep.subr.mxu0 %v1790
        %1823 = vmatpush1.msra.mxu0 %v1789
        %1824 = vmatprep.subr.mxu0 %v1788
        %1825 = vmatpush1.msra.mxu0 %v1787
        %1826 = vmatprep.subr.mxu0 %v1786
        %1827 = vmatpush1.msra.mxu0 %v1785
        %1828 = vmatprep.subr.mxu0 %v1784
        %1829 = vmatpush1.msra.mxu0 %v1783
        %1830 = vmatprep.subr.mxu0 %v1782
        %1831 = vmatpush1.msra.mxu0 %v1781
        %1832 = vmatprep.subr.mxu0 %v1780
        %1833 = vmatpush1.msra.mxu0 %v1779
        %1834 = vmatprep.subr.mxu0 %v1778
        %1835 = vmatpush1.msra.mxu0 %v1777
        %1836 = vmatprep.subr.mxu0 0.0
        %1837 = vmatpush2.msra.mxu0 0.0
        %1838 = vmatprep.subr.mxu0 0.0
        %1839 = vmatpush2.msra.mxu0 0.0
        %1840 = vmatprep.subr.mxu0 0.0
        %1841 = vmatpush2.msra.mxu0 0.0
        %1842 = vmatprep.subr.mxu0 0.0
        %1843 = vmatpush2.msra.mxu0 0.0
        %1844 = vmatprep.subr.mxu0 0.0
        %1845 = vmatpush2.msra.mxu0 0.0
        %1846 = vmatprep.subr.mxu0 0.0
        %1847 = vmatpush2.msra.mxu0 0.0
        %1848 = vmatprep.subr.mxu0 0.0
        %1849 = vmatpush2.msra.mxu0 0.0
        %1850 = vmatprep.subr.mxu0 0.0
        %1851 = vmatpush2.msra.mxu0 0.0
        %1852 = vmatprep.subr.mxu0 0.0
        %1853 = vmatpush2.msra.mxu0 0.0
        %1854 = vmatprep.subr.mxu0 0.0
        %1855 = vmatpush2.msra.mxu0 0.0
        %1856 = vmatprep.subr.mxu0 0.0
        %1857 = vmatpush2.msra.mxu0 0.0
        %1858 = vmatprep.subr.mxu0 0.0
        %1859 = vmatpush2.msra.mxu0 0.0
        %1860 = vmatprep.subr.mxu0 0.0
        %1861 = vmatpush2.msra.mxu0 0.0
        %1862 = vmatprep.subr.mxu0 0.0
        %1863 = vmatpush2.msra.mxu0 0.0
        %1864 = vmatprep.subr.mxu0 0.0
        %1865 = vmatpush2.msra.mxu0 0.0
        %1866 = vmatprep.subr.mxu0 0.0
        %1867 = vmatpush2.msra.mxu0 0.0
        %1868 = vmatprep.mubr.f32.mxu0 0.0
        %1869 = vmatmul.mubr.f32.gmra.mxu0 %v472
        %v1870 = vpop.f32.mrf.mxu0
        %v1871 = vadd.f32 %v1796, %v1870
        %v1872 = vpop.f32.mrf.mxu0
        %v1873 = vadd.f32 %v1797, %v1872
        %1874 = vmatprep.mubr.f32.mxu0 0.0
        %1875 = vmatmul.mubr.f32.gmra.mxu0 %v475
        %v1876 = vpop.f32.mrf.mxu0
        %v1877 = vadd.f32 %v1798, %v1876
        %v1878 = vpop.f32.mrf.mxu0
        %v1879 = vadd.f32 %v1799, %v1878
        %1880 = vmatprep.mubr.f32.mxu0 0.0
        %1881 = vmatmul.mubr.f32.gmra.mxu0 %v478
        %v1882 = vpop.f32.mrf.mxu0
        %v1883 = vadd.f32 %v1800, %v1882
        %v1884 = vpop.f32.mrf.mxu0
        %v1885 = vadd.f32 %v1801, %v1884
        %1886 = vmatprep.mubr.f32.mxu0 0.0
        %1887 = vmatmul.mubr.f32.gmra.mxu0 %v481
        %v1888 = vpop.f32.mrf.mxu0
        %v1889 = vadd.f32 %v1802, %v1888
        %v1890 = vpop.f32.mrf.mxu0
        %v1891 = vadd.f32 %v1803, %v1890
        %1892 = vdwg.mxu0
        %v1893 = vxor.u32 %v1871, 2147483648
        %v1894 = vxor.u32 %v1873, 2147483648
        %v1895 = vxor.u32 %v1877, 2147483648
        %v1896 = vxor.u32 %v1879, 2147483648
        %v1897 = vxor.u32 %v1883, 2147483648
        %v1898 = vxor.u32 %v1885, 2147483648
        %v1899 = vxor.u32 %v1889, 2147483648
        %v1900 = vxor.u32 %v1891, 2147483648
        %v1901 = vmul.f32 %v1893, 1.442695
        %v1902 = vpow.pop %v1901
        %v1903 = vmul.f32 %v1894, 1.442695
        %v1904 = vpow.pop %v1903
        %v1905 = vmul.f32 %v1895, 1.442695
        %v1906 = vpow.pop %v1905
        %v1907 = vmul.f32 %v1896, 1.442695
        %v1908 = vpow.pop %v1907
        %v1909 = vmul.f32 %v1897, 1.442695
        %v1910 = vpow.pop %v1909
        %v1911 = vmul.f32 %v1898, 1.442695
        %v1912 = vpow.pop %v1911
        %v1913 = vmul.f32 %v1899, 1.442695
        %v1914 = vpow.pop %v1913
        %v1915 = vmul.f32 %v1900, 1.442695
        %v1916 = vpow.pop %v1915
        %v1917 = vadd.f32 %v1902, 1.0
        %v1918 = vadd.f32 %v1904, 1.0
        %v1919 = vadd.f32 %v1906, 1.0
        %v1920 = vadd.f32 %v1908, 1.0
        %v1921 = vadd.f32 %v1910, 1.0
        %v1922 = vadd.f32 %v1912, 1.0
        %v1923 = vadd.f32 %v1914, 1.0
        %v1924 = vadd.f32 %v1916, 1.0
        %v1925 = vrcp.pop %v1917
        %v1926 = vmul.f32 1.0, %v1925
        %v1927 = vrcp.pop %v1918
        %v1928 = vmul.f32 1.0, %v1927
        %v1929 = vrcp.pop %v1919
        %v1930 = vmul.f32 1.0, %v1929
        %v1931 = vrcp.pop %v1920
        %v1932 = vmul.f32 1.0, %v1931
        %v1933 = vrcp.pop %v1921
        %v1934 = vmul.f32 1.0, %v1933
        %v1935 = vrcp.pop %v1922
        %v1936 = vmul.f32 1.0, %v1935
        %v1937 = vrcp.pop %v1923
        %v1938 = vmul.f32 1.0, %v1937
        %v1939 = vrcp.pop %v1924
        %v1940 = vmul.f32 1.0, %v1939
        %v1941 = vmul.f32 %v1871, %v1926
        %v1942 = vmul.f32 %v1873, %v1928
        %v1943 = vmul.f32 %v1877, %v1930
        %v1944 = vmul.f32 %v1879, %v1932
        %v1945 = vmul.f32 %v1883, %v1934
        %v1946 = vmul.f32 %v1885, %v1936
        %v1947 = vmul.f32 %v1889, %v1938
        %v1948 = vmul.f32 %v1891, %v1940
        %1949 = vmatprep.subr.mxu0 0.0
        %1950 = vmatpush1.msra.mxu0 0.0
        %1951 = vmatprep.subr.mxu0 0.0
        %1952 = vmatpush1.msra.mxu0 0.0
        %1953 = vmatprep.subr.mxu0 0.0
        %1954 = vmatpush1.msra.mxu0 0.0
        %1955 = vmatprep.subr.mxu0 0.0
        %1956 = vmatpush1.msra.mxu0 0.0
        %1957 = vmatprep.subr.mxu0 0.0
        %1958 = vmatpush1.msra.mxu0 0.0
        %1959 = vmatprep.subr.mxu0 0.0
        %1960 = vmatpush1.msra.mxu0 0.0
        %1961 = vmatprep.subr.mxu0 0.0
        %1962 = vmatpush1.msra.mxu0 0.0
        %1963 = vmatprep.subr.mxu0 0.0
        %1964 = vmatpush1.msra.mxu0 0.0
        %1965 = vmatprep.subr.mxu0 0.0
        %1966 = vmatpush1.msra.mxu0 0.0
        %1967 = vmatprep.subr.mxu0 0.0
        %1968 = vmatpush1.msra.mxu0 0.0
        %1969 = vmatprep.subr.mxu0 0.0
        %1970 = vmatpush1.msra.mxu0 0.0
        %1971 = vmatprep.subr.mxu0 0.0
        %1972 = vmatpush1.msra.mxu0 0.0
        %1973 = vmatprep.subr.mxu0 %v1948
        %1974 = vmatpush1.msra.mxu0 %v1947
        %1975 = vmatprep.subr.mxu0 %v1946
        %1976 = vmatpush1.msra.mxu0 %v1945
        %1977 = vmatprep.subr.mxu0 %v1944
        %1978 = vmatpush1.msra.mxu0 %v1943
        %1979 = vmatprep.subr.mxu0 %v1942
        %1980 = vmatpush1.msra.mxu0 %v1941
        %1981 = vmatprep.subr.mxu0 0.0
        %1982 = vmatpush2.msra.mxu0 0.0
        %1983 = vmatprep.subr.mxu0 0.0
        %1984 = vmatpush2.msra.mxu0 0.0
        %1985 = vmatprep.subr.mxu0 0.0
        %1986 = vmatpush2.msra.mxu0 0.0
        %1987 = vmatprep.subr.mxu0 0.0
        %1988 = vmatpush2.msra.mxu0 0.0
        %1989 = vmatprep.subr.mxu0 0.0
        %1990 = vmatpush2.msra.mxu0 0.0
        %1991 = vmatprep.subr.mxu0 0.0
        %1992 = vmatpush2.msra.mxu0 0.0
        %1993 = vmatprep.subr.mxu0 0.0
        %1994 = vmatpush2.msra.mxu0 0.0
        %1995 = vmatprep.subr.mxu0 0.0
        %1996 = vmatpush2.msra.mxu0 0.0
        %1997 = vmatprep.subr.mxu0 0.0
        %1998 = vmatpush2.msra.mxu0 0.0
        %1999 = vmatprep.subr.mxu0 0.0
        %2000 = vmatpush2.msra.mxu0 0.0
        %2001 = vmatprep.subr.mxu0 0.0
        %2002 = vmatpush2.msra.mxu0 0.0
        %2003 = vmatprep.subr.mxu0 0.0
        %2004 = vmatpush2.msra.mxu0 0.0
        %2005 = vmatprep.subr.mxu0 0.0
        %2006 = vmatpush2.msra.mxu0 0.0
        %2007 = vmatprep.subr.mxu0 0.0
        %2008 = vmatpush2.msra.mxu0 0.0
        %2009 = vmatprep.subr.mxu0 0.0
        %2010 = vmatpush2.msra.mxu0 0.0
        %2011 = vmatprep.subr.mxu0 0.0
        %2012 = vmatpush2.msra.mxu0 0.0
        %2013 = vmatprep.mubr.f32.mxu0 0.0
        %2014 = vmatmul.mubr.f32.gmra.mxu0 %v630
        %v2015 = vpop.f32.mrf.mxu0
        %v2016 = vadd.f32 0.0, %v2015
        %v2017 = vpop.f32.mrf.mxu0
        %v2018 = vadd.f32 0.0, %v2017
        %2019 = vmatprep.mubr.f32.mxu0 0.0
        %2020 = vmatmul.mubr.f32.gmra.mxu0 %v633
        %v2021 = vpop.f32.mrf.mxu0
        %v2022 = vadd.f32 0.0, %v2021
        %v2023 = vpop.f32.mrf.mxu0
        %v2024 = vadd.f32 0.0, %v2023
        %2025 = vmatprep.mubr.f32.mxu0 0.0
        %2026 = vmatmul.mubr.f32.gmra.mxu0 %v636
        %v2027 = vpop.f32.mrf.mxu0
        %v2028 = vadd.f32 0.0, %v2027
        %v2029 = vpop.f32.mrf.mxu0
        %v2030 = vadd.f32 0.0, %v2029
        %2031 = vmatprep.mubr.f32.mxu0 0.0
        %2032 = vmatmul.mubr.f32.gmra.mxu0 %v639
        %v2033 = vpop.f32.mrf.mxu0
        %v2034 = vadd.f32 0.0, %v2033
        %v2035 = vpop.f32.mrf.mxu0
        %v2036 = vadd.f32 0.0, %v2035
        %2037 = vmatprep.mubr.f32.mxu0 0.0
        %2038 = vmatmul.mubr.f32.gmra.mxu0 %v642
        %v2039 = vpop.f32.mrf.mxu0
        %v2040 = vadd.f32 0.0, %v2039
        %v2041 = vpop.f32.mrf.mxu0
        %v2042 = vadd.f32 0.0, %v2041
        %2043 = vmatprep.mubr.f32.mxu0 0.0
        %2044 = vmatmul.mubr.f32.gmra.mxu0 %v645
        %v2045 = vpop.f32.mrf.mxu0
        %v2046 = vadd.f32 0.0, %v2045
        %v2047 = vpop.f32.mrf.mxu0
        %v2048 = vadd.f32 0.0, %v2047
        %2049 = vmatprep.mubr.f32.mxu0 0.0
        %2050 = vmatmul.mubr.f32.gmra.mxu0 %v648
        %v2051 = vpop.f32.mrf.mxu0
        %v2052 = vadd.f32 0.0, %v2051
        %v2053 = vpop.f32.mrf.mxu0
        %v2054 = vadd.f32 0.0, %v2053
        %2055 = vmatprep.mubr.f32.mxu0 0.0
        %2056 = vmatmul.mubr.f32.gmra.mxu0 %v651
        %v2057 = vpop.f32.mrf.mxu0
        %v2058 = vadd.f32 0.0, %v2057
        %v2059 = vpop.f32.mrf.mxu0
        %v2060 = vadd.f32 0.0, %v2059
        %2061 = vmatprep.mubr.f32.mxu0 0.0
        %2062 = vmatmul.mubr.f32.gmra.mxu0 %v654
        %v2063 = vpop.f32.mrf.mxu0
        %v2064 = vadd.f32 0.0, %v2063
        %v2065 = vpop.f32.mrf.mxu0
        %v2066 = vadd.f32 0.0, %v2065
        %2067 = vdwg.mxu0
        %2068 = vrot.lane.b32.xlu0 %v2016, 17
        %v2069 = vpop.permute.xlu0 %2068
        %2070 = vrot.lane.b32.xlu0 %v2018, 17
        %v2071 = vpop.permute.xlu0 %2070
        %v2072 = vsel %vm392, %v2069, %v2071
        %v2073 = vsel %vm392, %v2071, %v2069
        %v2074 = vmul.f32 %v2073, %v346
        %v2075 = vmul.f32 %v2072, %v347
        %v2076 = vadd.f32 %v2040, %v2074
        %v2077 = vadd.f32 %v2042, %v2075
        %2078 = vrot.lane.b32.xlu0 %v2022, 16
        %v2079 = vpop.permute.xlu0 %2078
        %2080 = vrot.lane.b32.xlu0 %v2024, 16
        %v2081 = vpop.permute.xlu0 %2080
        %v2082 = vsel %vm399, %v2079, %v2081
        %v2083 = vsel %vm399, %v2081, %v2079
        %v2084 = vmul.f32 %v2083, %v348
        %v2085 = vmul.f32 %v2082, %v349
        %v2086 = vadd.f32 %v2076, %v2084
        %v2087 = vadd.f32 %v2077, %v2085
        %2088 = vrot.lane.b32.xlu0 %v2028, 15
        %v2089 = vpop.permute.xlu0 %2088
        %2090 = vrot.lane.b32.xlu0 %v2030, 15
        %v2091 = vpop.permute.xlu0 %2090
        %v2092 = vsel %vm406, %v2089, %v2091
        %v2093 = vsel %vm406, %v2091, %v2089
        %v2094 = vmul.f32 %v2093, %v350
        %v2095 = vmul.f32 %v2092, %v351
        %v2096 = vadd.f32 %v2086, %v2094
        %v2097 = vadd.f32 %v2087, %v2095
        %2098 = vrot.lane.b32.xlu0 %v2034, 1
        %v2099 = vpop.permute.xlu0 %2098
        %2100 = vrot.lane.b32.xlu0 %v2036, 1
        %v2101 = vpop.permute.xlu0 %2100
        %v2102 = vsel %vm413, %v2099, %v2101
        %v2103 = vsel %vm413, %v2101, %v2099
        %v2104 = vmul.f32 %v2103, %v352
        %v2105 = vmul.f32 %v2102, %v353
        %v2106 = vadd.f32 %v2096, %v2104
        %v2107 = vadd.f32 %v2097, %v2105
        %2108 = vrot.lane.b32.xlu0 %v2046, 127
        %v2109 = vpop.permute.xlu0 %2108
        %2110 = vrot.lane.b32.xlu0 %v2048, 127
        %v2111 = vpop.permute.xlu0 %2110
        %v2112 = vsel %vm420, %v2109, %v2111
        %v2113 = vsel %vm420, %v2111, %v2109
        %v2114 = vmul.f32 %v2112, %v356
        %v2115 = vmul.f32 %v2113, %v357
        %v2116 = vadd.f32 %v2106, %v2114
        %v2117 = vadd.f32 %v2107, %v2115
        %2118 = vrot.lane.b32.xlu0 %v2052, 113
        %v2119 = vpop.permute.xlu0 %2118
        %2120 = vrot.lane.b32.xlu0 %v2054, 113
        %v2121 = vpop.permute.xlu0 %2120
        %v2122 = vsel %vm427, %v2119, %v2121
        %v2123 = vsel %vm427, %v2121, %v2119
        %v2124 = vmul.f32 %v2122, %v358
        %v2125 = vmul.f32 %v2123, %v359
        %v2126 = vadd.f32 %v2116, %v2124
        %v2127 = vadd.f32 %v2117, %v2125
        %2128 = vrot.lane.b32.xlu0 %v2058, 112
        %v2129 = vpop.permute.xlu0 %2128
        %2130 = vrot.lane.b32.xlu0 %v2060, 112
        %v2131 = vpop.permute.xlu0 %2130
        %v2132 = vsel %vm434, %v2129, %v2131
        %v2133 = vsel %vm434, %v2131, %v2129
        %v2134 = vmul.f32 %v2132, %v360
        %v2135 = vmul.f32 %v2133, %v361
        %v2136 = vadd.f32 %v2126, %v2134
        %v2137 = vadd.f32 %v2127, %v2135
        %2138 = vrot.lane.b32.xlu0 %v2064, 111
        %v2139 = vpop.permute.xlu0 %2138
        %2140 = vrot.lane.b32.xlu0 %v2066, 111
        %v2141 = vpop.permute.xlu0 %2140
        %v2142 = vsel %vm441, %v2139, %v2141
        %v2143 = vsel %vm441, %v2141, %v2139
        %v2144 = vmul.f32 %v2142, %v362
        %v2145 = vmul.f32 %v2143, %v363
        %v2146 = vadd.f32 %v2136, %v2144
        %v2147 = vadd.f32 %v2137, %v2145
        %v2148 = vadd.f32 %v2146, %v377
        %v2149 = vadd.f32 %v2147, %v378
        %v2150 = vstv %s1725
        %v2151 = vmul.f32 %v2148, %v2150
        %v2152 = vmul.f32 %v2149, %v2150
        %v2153 = vadd.f32 %v1722, %v2151
        %v2154 = vadd.f32 %v1723, %v2152
        %2155 = vst [vmem:[%s340] sm:$0xff] %v2153
        %2156 = vst [vmem:[%s340 + $0x8] sm:$0xff] %v2154
        %s2157 = sand.u32 %s191, 1
        %s2158 = scalar_lea.sflag [#allocation4], %s2157
        %s2159 = sand.u32 %s191, 1
        %s2160 = smul.addr %s2159, 16
        %s2161 = scalar_lea.vmem [#allocation9], %s2160
        // Predicated region
        $region61: #{tpu_custom_call.1} parent=47 // pred_check
          %p2162 = pneg %p201
        $region62: #{tpu_custom_call.1} parent=47 // pred_check_branch
          %2164 = sbr.rel (%p2162) target = $region64
        $region63: #{tpu_custom_call.1} parent=47 // pred_region
          %s2166 = ssub.s32 256, 256
          %2167 = vsyncadd %s2158, %s2166
          %s2168 = smul.addr %s26, 2
          %s2169 = smul.addr %s2168, 128
          %s2170 = scalar_lea.hbm %s7, %s2169
          %s2172 = sshll.u32 %s2161, 4
          %s2173 = int_to_ptr.vmem [resolvable:$true] %s2172
          %2175 = dma.vmem_to_hbm [thread:$0]  %s2173, 256, %s2170, %s2158
        $region64: #{tpu_custom_call.1} parent=47 // pred_fallthru
          _
      $region48: #{tpu_custom_call.1} parent=5 // pred_fallthru
        _
      %p2176 = scmp.le.s32.totalorder 2, %s21
      // Predicated region
      $region65: #{tpu_custom_call.1} parent=5 // pred_check
        %p2177 = pneg %p2176
      $region66: #{tpu_custom_call.1} parent=5 // pred_check_branch
        %2179 = sbr.rel (%p2177) target = $region68
      $region67: #{tpu_custom_call.1} parent=5 // pred_region
        %s2180 = ssub.s32 %s21, 2
        // Predicated region
        $region69: #{tpu_custom_call.1} parent=67 // pred_check
          %p2181 = pneg %p207
        $region70: #{tpu_custom_call.1} parent=67 // pred_check_branch
          %2183 = sbr.rel (%p2181) target = $region72
        $region71: #{tpu_custom_call.1} parent=67 // pred_region
          %s2184 = sand.u32 %s192, 1
          %s2185 = scalar_lea.sflag [#allocation4], %s2184
          %s2186 = sand.u32 %s192, 1
          %s2187 = smul.addr %s2186, 16
          %s2188 = scalar_lea.vmem [#allocation9], %s2187
          %2189 = dma.done %s2185, 256
        $region72: #{tpu_custom_call.1} parent=67 // pred_fallthru
          _
      $region68: #{tpu_custom_call.1} parent=5 // pred_fallthru
        _
    $region6: #{tpu_custom_call.1} parent=1 // loop_footer
      %s25 = sadd.s32 1, %s21
    $region7: #{tpu_custom_call.1} parent=1 // loop_footer_branch
      %20 = sbr.rel target = $region3
    $region8: #{tpu_custom_call.1} parent=1 // loop_exit
      _
    %2190 = vsyncpa [#allocation3], 1
    %s2191 = scalar_lea.sflag [#allocation3], 1
    %2192 = vsyncpa %s2191, 1
    %2193 = vsyncpa [#allocation8], 1
    %2194 = vsyncpa [#allocation4], 1
    %s2195 = scalar_lea.sflag [#allocation4], 1
    %2196 = vsyncpa %s2195, 1
    %2197 = vsyncpa [#allocation5], 1
    %s2198 = scalar_lea.sflag [#allocation5], 1
    %2199 = vsyncpa %s2198, 1

</llo_original>
